<compile_context>
chip_gen: v6e
topology: v6e:2x2x1
jax: 0.10.0
libtpu: 0.0.40
codegen_flags: <defaults>
</compile_context>

<pallas_src>
import functools
import math

import jax
import jax.numpy as jnp
from jax.experimental import pallas as pl
from jax.experimental.pallas import tpu as pltpu


def _gnn_node_kernel(x_ref, w_ref, b_ref, o_ref, *, neighbor_num):
    B, N, C = x_ref.shape
    eps = 1e-5
    neg_inf = jnp.float32(-jnp.inf)

    x = x_ref[...].astype(jnp.float32)                      # upcast in-kernel
    x2d = x.reshape(B * N, C)

    # ---- U(x), V(x): one wide slab matmul (pre-packed bf16 [U|V], f32 accumulation) ----
    uv = jnp.dot(x2d.astype(jnp.bfloat16), w_ref[...],
                 preferred_element_type=jnp.float32) + b_ref[...]      # (B*N, 2C)
    ux = uv[:, :C].reshape(B, N, C)
    vx = uv[:, C:].reshape(B, N, C)

    # ---- similarity (metric='dots'); HIGHEST precision => exact f32 top-k parity ----
    sim = jnp.einsum('bic,bjc->bij', x, x,
                     precision=jax.lax.Precision.HIGHEST,
                     preferred_element_type=jnp.float32)               # (B, N, N)
    rows = sim.reshape(B * N, N)

    # ---- k-th largest per row: neighbor_num-step running max + mask.  The running
    # "count of elements >= current max" keeps torch.topk duplicate/tie semantics. ----
    remaining = rows
    thr = jnp.zeros((B * N, 1), jnp.float32)
    cum = jnp.zeros((B * N, 1), jnp.float32)
    found = jnp.zeros((B * N, 1), jnp.bool_)
    for _ in range(neighbor_num):                                      # compile-time k
        m = jnp.max(remaining, axis=-1, keepdims=True)                 # current max
        cnt = jnp.sum(jnp.where(remaining >= m, 1.0, 0.0),
                      axis=-1, keepdims=True)                          # multiplicity
        cum = cum + cnt
        thr = jnp.where(found, thr, m)
        found = jnp.logical_or(found, cum >= float(neighbor_num))
        remaining = jnp.where(remaining >= m, neg_inf, remaining)
    adj2d = jnp.where(rows >= thr, 1.0, 0.0)                           # (B*N, N)
    adj = adj2d.reshape(B, N, N)

    # ---- normalize_digraph: A = D^{-1/2} adj D^{-1/2}; deg >= neighbor_num >= 1 ----
    dinv = jax.lax.rsqrt(
        jnp.sum(adj2d, axis=-1, keepdims=True)).reshape(B, N, 1)

    # agg = A @ V(x) == dinv_i * (adj @ (dinv_j * V(x))).  Contraction depth is only N,
    # so do it as N unrolled f32 VPU FMAs instead of an MXU matmul (exact, no fill/drain).
    svx = vx * dinv                                                    # (B, N, C)
    acc = jnp.zeros((B, N, C), jnp.float32)
    for j in range(N):                                                 # compile-time N
        acc = acc + adj[:, :, j:j + 1] * svx[:, j:j + 1, :]
    agg = acc * dinv

    # ---- BatchNorm1d(num_classes): train-mode stats per node index over (batch, ch) ----
    z = agg + ux
    mu = jnp.mean(jnp.mean(z, axis=2, keepdims=True),
                  axis=0, keepdims=True)                               # (1, N, 1)
    d = z - mu
    var = jnp.mean(jnp.mean(d * d, axis=2, keepdims=True),
                   axis=0, keepdims=True)                              # biased variance
    zn = d * jax.lax.rsqrt(var + eps)                                  # weight=1, bias=0

    o_ref[...] = jnp.maximum(x + zn, 0.0).astype(o_ref.dtype)


def pack_gnn_node_params(w_u, b_u, w_v, b_v):
    """One-time packing (call at init, NOT per forward): [U | V] as a single bf16
    (C, 2C) RHS plus a f32 (1, 2C) bias.  Weights are stored (in, out) so the kernel
    computes x @ W (== nn.Linear with weight W.T)."""
    C = w_u.shape[0]
    w_uv = jnp.concatenate([w_u, w_v], axis=1).astype(jnp.bfloat16)    # (C, 2C)
    b_uv = jnp.concatenate([b_u, b_v], axis=0).reshape(1, 2 * C).astype(jnp.float32)
    return w_uv, b_uv


def gnn_node_forward(x, w_uv, b_uv, *, neighbor_num, out_dtype=None):
    """x: (B, N, C) in its native dtype (f32 or bf16).  w_uv/b_uv from
    pack_gnn_node_params.  Output dtype defaults to x.dtype."""
    B, N, C = x.shape
    assert neighbor_num <= N, "neighbor_num must not exceed the node count"
    assert w_uv.shape == (C, 2 * C) and b_uv.shape == (1, 2 * C)
    out_dtype = x.dtype if out_dtype is None else out_dtype

    # VMEM guard: all-resident design.  Rough live-bytes estimate (f32 slabs + padded
    # N*N tiles + weight slab + Pallas I/O buffers); stay well under the v7x default
    # scoped limit (32 MiB; 64 MiB physical) — add a grid before raising the limit.
    est_bytes = 4 * (10 * B * N * C + 8 * B * N * max(N, 128)) + 2 * C * 2 * C + 8 * C
    assert est_bytes < 24 * 1024 * 1024, (
        "GNN_Node all-resident kernel would exceed the v7x scoped-VMEM budget; "
        "re-derive tiling / add a grid axis for this problem size.")

    vmem = pl.BlockSpec(memory_space=pltpu.MemorySpace.VMEM)
    return pl.pallas_call(
        functools.partial(_gnn_node_kernel, neighbor_num=neighbor_num),
        out_shape=jax.ShapeDtypeStruct((B, N, C), out_dtype),
        in_specs=[vmem, vmem, vmem],
        out_specs=vmem,
    )(x, w_uv, b_uv)


def init_params(key, in_channels):
    # U/V: weight ~ normal(0, sqrt(2/in)) as in __init__, stored as (in, out) so the
    # kernel computes x @ W (== nn.Linear with weight W.T); bias: PyTorch default
    # uniform(-1/sqrt(in), 1/sqrt(in)).
    kwu, kbu, kwv, kbv = jax.random.split(key, 4)
    scale = math.sqrt(2.0 / in_channels)
    bound = 1.0 / math.sqrt(in_channels)
    w_u = scale * jax.random.normal(kwu, (in_channels, in_channels), jnp.float32)
    w_v = scale * jax.random.normal(kwv, (in_channels, in_channels), jnp.float32)
    b_u = jax.random.uniform(kbu, (in_channels,), jnp.float32, -bound, bound)
    b_v = jax.random.uniform(kbv, (in_channels,), jnp.float32, -bound, bound)
    return w_u, b_u, w_v, b_v


if __name__ == "__main__":
    B, N, C = 2, 8, 128          # batch, num_classes (graph nodes), in_channels
    neighbor_num = 4
    key = jax.random.PRNGKey(0)
    kx, kp = jax.random.split(key)
    x = jax.random.normal(kx, (B, N, C), jnp.float32)
    w_u, b_u, w_v, b_v = init_params(kp, C)

    # Pack the weights once, outside the per-call hot path.
    w_uv, b_uv = pack_gnn_node_params(w_u, b_u, w_v, b_v)

    out = gnn_node_forward(x, w_uv, b_uv, neighbor_num=neighbor_num)
    jax.block_until_ready(out)

    assert out.shape == (B, N, C)
    assert out.dtype == x.dtype
    assert bool(jnp.all(jnp.isfinite(out)))
    assert bool(jnp.all(out >= 0.0))   # ReLU output
    print("KERNEL_OK")
</pallas_src>

<mosaic_0001>
module attributes {stable_mosaic.version = 11 : i64} {
  func.func @_gnn_node_kernel(%arg0: memref<2x8x128xf32, #tpu.memory_space<vmem>>, %arg1: memref<128x256xbf16, #tpu.memory_space<vmem>>, %arg2: memref<1x256xf32, #tpu.memory_space<vmem>>, %arg3: memref<2x8x128xf32, #tpu.memory_space<vmem>>) attributes {dimension_semantics = [], scalar_prefetch = 0 : i64, scratch_operands = 0 : i64, tpu.core_type = #tpu.core_type<tc>} {
    %c0 = arith.constant 0 : index
    %c0_0 = arith.constant 0 : index
    %c0_1 = arith.constant 0 : index
    %0 = vector.load %arg0[%c0, %c0_0, %c0_1] : memref<2x8x128xf32, #tpu.memory_space<vmem>>, vector<2x8x128xf32>
    %1 = vector.shape_cast %0 : vector<2x8x128xf32> to vector<16x128xf32>
    %2 = arith.truncf %1 : vector<16x128xf32> to vector<16x128xbf16>
    %c0_2 = arith.constant 0 : index
    %c0_3 = arith.constant 0 : index
    %3 = vector.load %arg1[%c0_2, %c0_3] : memref<128x256xbf16, #tpu.memory_space<vmem>>, vector<128x256xbf16>
    %cst = arith.constant dense<0.000000e+00> : vector<16x256xf32>
    %4 = tpu.matmul %2, %3, %cst {dimension_numbers = #tpu.dot_dimension_numbers<[1], [0], [0], [1], [0, 0, 1, 1], [], []>} : vector<16x128xbf16>, vector<128x256xbf16>, vector<16x256xf32> -> vector<16x256xf32>
    %c0_4 = arith.constant 0 : index
    %c0_5 = arith.constant 0 : index
    %5 = vector.load %arg2[%c0_4, %c0_5] : memref<1x256xf32, #tpu.memory_space<vmem>>, vector<1x256xf32>
    %6 = vector.broadcast %5 : vector<1x256xf32> to vector<16x256xf32>
    %7 = arith.addf %4, %6 : vector<16x256xf32>
    %8 = vector.extract_strided_slice %7 {offsets = [0, 0], sizes = [16, 128], strides = [1, 1]} : vector<16x256xf32> to vector<16x128xf32>
    %9 = vector.shape_cast %8 : vector<16x128xf32> to vector<2x8x128xf32>
    %10 = vector.extract_strided_slice %7 {offsets = [0, 128], sizes = [16, 128], strides = [1, 1]} : vector<16x256xf32> to vector<16x128xf32>
    %11 = vector.shape_cast %10 : vector<16x128xf32> to vector<2x8x128xf32>
    "tpu.trace_start"() <{level = 10 : i32, message = "bic,bjc->bij"}> : () -> ()
    %cst_6 = arith.constant dense<0.000000e+00> : vector<2x8x8xf32>
    %12 = tpu.matmul %0, %0, %cst_6 {dimension_numbers = #tpu.dot_dimension_numbers<[2], [2], [1], [1], [0, 0, 0, 1, 1, 1], [0], [0]>, precision = #tpu.contract_precision<fp32>} : vector<2x8x128xf32>, vector<2x8x128xf32>, vector<2x8x8xf32> -> vector<2x8x8xf32>
    "tpu.trace_stop"() : () -> ()
    %13 = vector.shape_cast %12 : vector<2x8x8xf32> to vector<16x8xf32>
    %cst_7 = arith.constant 0.000000e+00 : f32
    %14 = vector.broadcast %cst_7 : f32 to vector<16x1xf32>
    %cst_8 = arith.constant 0.000000e+00 : f32
    %15 = vector.broadcast %cst_8 : f32 to vector<16x1xf32>
    %false = arith.constant false
    %16 = vector.broadcast %false : i1 to vector<16x1xi1>
    %cst_9 = arith.constant dense<0xFF800000> : vector<16xf32>
    %17 = vector.multi_reduction <maximumf>, %13, %cst_9 [1] : vector<16x8xf32> to vector<16xf32>
    %18 = vector.shape_cast %17 : vector<16xf32> to vector<16x1xf32>
    %19 = vector.broadcast %18 : vector<16x1xf32> to vector<16x8xf32>
    %20 = arith.cmpf oge, %13, %19 : vector<16x8xf32>
    %cst_10 = arith.constant 1.000000e+00 : f32
    %cst_11 = arith.constant 0.000000e+00 : f32
    %21 = vector.broadcast %cst_10 : f32 to vector<16x8xf32>
    %22 = vector.broadcast %cst_11 : f32 to vector<16x8xf32>
    %23 = arith.select %20, %21, %22 : vector<16x8xi1>, vector<16x8xf32>
    %cst_12 = arith.constant dense<0.000000e+00> : vector<16xf32>
    %24 = vector.multi_reduction <add>, %23, %cst_12 [1] : vector<16x8xf32> to vector<16xf32>
    %25 = vector.shape_cast %24 : vector<16xf32> to vector<16x1xf32>
    %26 = arith.addf %15, %25 : vector<16x1xf32>
    %27 = arith.select %16, %14, %18 : vector<16x1xi1>, vector<16x1xf32>
    %cst_13 = arith.constant 4.000000e+00 : f32
    %28 = vector.broadcast %cst_13 : f32 to vector<16x1xf32>
    %29 = arith.cmpf oge, %26, %28 : vector<16x1xf32>
    %30 = arith.ori %16, %29 : vector<16x1xi1>
    %31 = vector.broadcast %18 : vector<16x1xf32> to vector<16x8xf32>
    %32 = arith.cmpf oge, %13, %31 : vector<16x8xf32>
    %cst_14 = arith.constant 0xFF800000 : f32
    %33 = vector.broadcast %cst_14 : f32 to vector<16x8xf32>
    %34 = arith.select %32, %33, %13 : vector<16x8xi1>, vector<16x8xf32>
    %cst_15 = arith.constant dense<0xFF800000> : vector<16xf32>
    %35 = vector.multi_reduction <maximumf>, %34, %cst_15 [1] : vector<16x8xf32> to vector<16xf32>
    %36 = vector.shape_cast %35 : vector<16xf32> to vector<16x1xf32>
    %37 = vector.broadcast %36 : vector<16x1xf32> to vector<16x8xf32>
    %38 = arith.cmpf oge, %34, %37 : vector<16x8xf32>
    %cst_16 = arith.constant 1.000000e+00 : f32
    %cst_17 = arith.constant 0.000000e+00 : f32
    %39 = vector.broadcast %cst_16 : f32 to vector<16x8xf32>
    %40 = vector.broadcast %cst_17 : f32 to vector<16x8xf32>
    %41 = arith.select %38, %39, %40 : vector<16x8xi1>, vector<16x8xf32>
    %cst_18 = arith.constant dense<0.000000e+00> : vector<16xf32>
    %42 = vector.multi_reduction <add>, %41, %cst_18 [1] : vector<16x8xf32> to vector<16xf32>
    %43 = vector.shape_cast %42 : vector<16xf32> to vector<16x1xf32>
    %44 = arith.addf %26, %43 : vector<16x1xf32>
    %45 = arith.select %30, %27, %36 : vector<16x1xi1>, vector<16x1xf32>
    %cst_19 = arith.constant 4.000000e+00 : f32
    %46 = vector.broadcast %cst_19 : f32 to vector<16x1xf32>
    %47 = arith.cmpf oge, %44, %46 : vector<16x1xf32>
    %48 = arith.ori %30, %47 : vector<16x1xi1>
    %49 = vector.broadcast %36 : vector<16x1xf32> to vector<16x8xf32>
    %50 = arith.cmpf oge, %34, %49 : vector<16x8xf32>
    %cst_20 = arith.constant 0xFF800000 : f32
    %51 = vector.broadcast %cst_20 : f32 to vector<16x8xf32>
    %52 = arith.select %50, %51, %34 : vector<16x8xi1>, vector<16x8xf32>
    %cst_21 = arith.constant dense<0xFF800000> : vector<16xf32>
    %53 = vector.multi_reduction <maximumf>, %52, %cst_21 [1] : vector<16x8xf32> to vector<16xf32>
    %54 = vector.shape_cast %53 : vector<16xf32> to vector<16x1xf32>
    %55 = vector.broadcast %54 : vector<16x1xf32> to vector<16x8xf32>
    %56 = arith.cmpf oge, %52, %55 : vector<16x8xf32>
    %cst_22 = arith.constant 1.000000e+00 : f32
    %cst_23 = arith.constant 0.000000e+00 : f32
    %57 = vector.broadcast %cst_22 : f32 to vector<16x8xf32>
    %58 = vector.broadcast %cst_23 : f32 to vector<16x8xf32>
    %59 = arith.select %56, %57, %58 : vector<16x8xi1>, vector<16x8xf32>
    %cst_24 = arith.constant dense<0.000000e+00> : vector<16xf32>
    %60 = vector.multi_reduction <add>, %59, %cst_24 [1] : vector<16x8xf32> to vector<16xf32>
    %61 = vector.shape_cast %60 : vector<16xf32> to vector<16x1xf32>
    %62 = arith.addf %44, %61 : vector<16x1xf32>
    %63 = arith.select %48, %45, %54 : vector<16x1xi1>, vector<16x1xf32>
    %cst_25 = arith.constant 4.000000e+00 : f32
    %64 = vector.broadcast %cst_25 : f32 to vector<16x1xf32>
    %65 = arith.cmpf oge, %62, %64 : vector<16x1xf32>
    %66 = arith.ori %48, %65 : vector<16x1xi1>
    %67 = vector.broadcast %54 : vector<16x1xf32> to vector<16x8xf32>
    %68 = arith.cmpf oge, %52, %67 : vector<16x8xf32>
    %cst_26 = arith.constant 0xFF800000 : f32
    %69 = vector.broadcast %cst_26 : f32 to vector<16x8xf32>
    %70 = arith.select %68, %69, %52 : vector<16x8xi1>, vector<16x8xf32>
    %cst_27 = arith.constant dense<0xFF800000> : vector<16xf32>
    %71 = vector.multi_reduction <maximumf>, %70, %cst_27 [1] : vector<16x8xf32> to vector<16xf32>
    %72 = vector.shape_cast %71 : vector<16xf32> to vector<16x1xf32>
    %73 = arith.select %66, %63, %72 : vector<16x1xi1>, vector<16x1xf32>
    %74 = vector.broadcast %73 : vector<16x1xf32> to vector<16x8xf32>
    %75 = arith.cmpf oge, %13, %74 : vector<16x8xf32>
    %cst_28 = arith.constant 1.000000e+00 : f32
    %cst_29 = arith.constant 0.000000e+00 : f32
    %76 = vector.broadcast %cst_28 : f32 to vector<16x8xf32>
    %77 = vector.broadcast %cst_29 : f32 to vector<16x8xf32>
    %78 = arith.select %75, %76, %77 : vector<16x8xi1>, vector<16x8xf32>
    %79 = vector.shape_cast %78 : vector<16x8xf32> to vector<2x8x8xf32>
    %cst_30 = arith.constant dense<0.000000e+00> : vector<16xf32>
    %80 = vector.multi_reduction <add>, %78, %cst_30 [1] : vector<16x8xf32> to vector<16xf32>
    %81 = vector.shape_cast %80 : vector<16xf32> to vector<16x1xf32>
    %82 = math.rsqrt %81 : vector<16x1xf32>
    %83 = vector.shape_cast %82 : vector<16x1xf32> to vector<2x8x1xf32>
    %84 = vector.broadcast %83 : vector<2x8x1xf32> to vector<2x8x128xf32>
    %85 = arith.mulf %11, %84 : vector<2x8x128xf32>
    %cst_31 = arith.constant 0.000000e+00 : f32
    %86 = vector.broadcast %cst_31 : f32 to vector<2x8x128xf32>
    %87 = vector.extract_strided_slice %79 {offsets = [0, 0, 0], sizes = [2, 8, 1], strides = [1, 1, 1]} : vector<2x8x8xf32> to vector<2x8x1xf32>
    %88 = vector.extract_strided_slice %85 {offsets = [0, 0, 0], sizes = [2, 1, 128], strides = [1, 1, 1]} : vector<2x8x128xf32> to vector<2x1x128xf32>
    %89 = vector.broadcast %87 : vector<2x8x1xf32> to vector<2x8x128xf32>
    %90 = vector.broadcast %88 : vector<2x1x128xf32> to vector<2x8x128xf32>
    %91 = arith.mulf %89, %90 : vector<2x8x128xf32>
    %92 = arith.addf %86, %91 : vector<2x8x128xf32>
    %93 = vector.extract_strided_slice %79 {offsets = [0, 0, 1], sizes = [2, 8, 1], strides = [1, 1, 1]} : vector<2x8x8xf32> to vector<2x8x1xf32>
    %94 = vector.extract_strided_slice %85 {offsets = [0, 1, 0], sizes = [2, 1, 128], strides = [1, 1, 1]} : vector<2x8x128xf32> to vector<2x1x128xf32>
    %95 = vector.broadcast %93 : vector<2x8x1xf32> to vector<2x8x128xf32>
    %96 = vector.broadcast %94 : vector<2x1x128xf32> to vector<2x8x128xf32>
    %97 = arith.mulf %95, %96 : vector<2x8x128xf32>
    %98 = arith.addf %92, %97 : vector<2x8x128xf32>
    %99 = vector.extract_strided_slice %79 {offsets = [0, 0, 2], sizes = [2, 8, 1], strides = [1, 1, 1]} : vector<2x8x8xf32> to vector<2x8x1xf32>
    %100 = vector.extract_strided_slice %85 {offsets = [0, 2, 0], sizes = [2, 1, 128], strides = [1, 1, 1]} : vector<2x8x128xf32> to vector<2x1x128xf32>
    %101 = vector.broadcast %99 : vector<2x8x1xf32> to vector<2x8x128xf32>
    %102 = vector.broadcast %100 : vector<2x1x128xf32> to vector<2x8x128xf32>
    %103 = arith.mulf %101, %102 : vector<2x8x128xf32>
    %104 = arith.addf %98, %103 : vector<2x8x128xf32>
    %105 = vector.extract_strided_slice %79 {offsets = [0, 0, 3], sizes = [2, 8, 1], strides = [1, 1, 1]} : vector<2x8x8xf32> to vector<2x8x1xf32>
    %106 = vector.extract_strided_slice %85 {offsets = [0, 3, 0], sizes = [2, 1, 128], strides = [1, 1, 1]} : vector<2x8x128xf32> to vector<2x1x128xf32>
    %107 = vector.broadcast %105 : vector<2x8x1xf32> to vector<2x8x128xf32>
    %108 = vector.broadcast %106 : vector<2x1x128xf32> to vector<2x8x128xf32>
    %109 = arith.mulf %107, %108 : vector<2x8x128xf32>
    %110 = arith.addf %104, %109 : vector<2x8x128xf32>
    %111 = vector.extract_strided_slice %79 {offsets = [0, 0, 4], sizes = [2, 8, 1], strides = [1, 1, 1]} : vector<2x8x8xf32> to vector<2x8x1xf32>
    %112 = vector.extract_strided_slice %85 {offsets = [0, 4, 0], sizes = [2, 1, 128], strides = [1, 1, 1]} : vector<2x8x128xf32> to vector<2x1x128xf32>
    %113 = vector.broadcast %111 : vector<2x8x1xf32> to vector<2x8x128xf32>
    %114 = vector.broadcast %112 : vector<2x1x128xf32> to vector<2x8x128xf32>
    %115 = arith.mulf %113, %114 : vector<2x8x128xf32>
    %116 = arith.addf %110, %115 : vector<2x8x128xf32>
    %117 = vector.extract_strided_slice %79 {offsets = [0, 0, 5], sizes = [2, 8, 1], strides = [1, 1, 1]} : vector<2x8x8xf32> to vector<2x8x1xf32>
    %118 = vector.extract_strided_slice %85 {offsets = [0, 5, 0], sizes = [2, 1, 128], strides = [1, 1, 1]} : vector<2x8x128xf32> to vector<2x1x128xf32>
    %119 = vector.broadcast %117 : vector<2x8x1xf32> to vector<2x8x128xf32>
    %120 = vector.broadcast %118 : vector<2x1x128xf32> to vector<2x8x128xf32>
    %121 = arith.mulf %119, %120 : vector<2x8x128xf32>
    %122 = arith.addf %116, %121 : vector<2x8x128xf32>
    %123 = vector.extract_strided_slice %79 {offsets = [0, 0, 6], sizes = [2, 8, 1], strides = [1, 1, 1]} : vector<2x8x8xf32> to vector<2x8x1xf32>
    %124 = vector.extract_strided_slice %85 {offsets = [0, 6, 0], sizes = [2, 1, 128], strides = [1, 1, 1]} : vector<2x8x128xf32> to vector<2x1x128xf32>
    %125 = vector.broadcast %123 : vector<2x8x1xf32> to vector<2x8x128xf32>
    %126 = vector.broadcast %124 : vector<2x1x128xf32> to vector<2x8x128xf32>
    %127 = arith.mulf %125, %126 : vector<2x8x128xf32>
    %128 = arith.addf %122, %127 : vector<2x8x128xf32>
    %129 = vector.extract_strided_slice %79 {offsets = [0, 0, 7], sizes = [2, 8, 1], strides = [1, 1, 1]} : vector<2x8x8xf32> to vector<2x8x1xf32>
    %130 = vector.extract_strided_slice %85 {offsets = [0, 7, 0], sizes = [2, 1, 128], strides = [1, 1, 1]} : vector<2x8x128xf32> to vector<2x1x128xf32>
    %131 = vector.broadcast %129 : vector<2x8x1xf32> to vector<2x8x128xf32>
    %132 = vector.broadcast %130 : vector<2x1x128xf32> to vector<2x8x128xf32>
    %133 = arith.mulf %131, %132 : vector<2x8x128xf32>
    %134 = arith.addf %128, %133 : vector<2x8x128xf32>
    %135 = vector.broadcast %83 : vector<2x8x1xf32> to vector<2x8x128xf32>
    %136 = arith.mulf %134, %135 : vector<2x8x128xf32>
    %137 = arith.addf %136, %9 : vector<2x8x128xf32>
    %cst_32 = arith.constant dense<0.000000e+00> : vector<2x8xf32>
    %138 = vector.multi_reduction <add>, %137, %cst_32 [2] : vector<2x8x128xf32> to vector<2x8xf32>
    %139 = vector.shape_cast %138 : vector<2x8xf32> to vector<2x8x1xf32>
    %cst_33 = arith.constant 1.280000e+02 : f32
    %140 = vector.broadcast %cst_33 : f32 to vector<2x8x1xf32>
    %141 = arith.divf %139, %140 : vector<2x8x1xf32>
    %cst_34 = arith.constant dense<0.000000e+00> : vector<8x1xf32>
    %142 = vector.multi_reduction <add>, %141, %cst_34 [0] : vector<2x8x1xf32> to vector<8x1xf32>
    %143 = vector.shape_cast %142 : vector<8x1xf32> to vector<1x8x1xf32>
    %cst_35 = arith.constant 2.000000e+00 : f32
    %144 = vector.broadcast %cst_35 : f32 to vector<1x8x1xf32>
    %145 = arith.divf %143, %144 : vector<1x8x1xf32>
    %146 = vector.broadcast %145 : vector<1x8x1xf32> to vector<2x8x128xf32>
    %147 = arith.subf %137, %146 : vector<2x8x128xf32>
    %148 = arith.mulf %147, %147 : vector<2x8x128xf32>
    %cst_36 = arith.constant dense<0.000000e+00> : vector<2x8xf32>
    %149 = vector.multi_reduction <add>, %148, %cst_36 [2] : vector<2x8x128xf32> to vector<2x8xf32>
    %150 = vector.shape_cast %149 : vector<2x8xf32> to vector<2x8x1xf32>
    %cst_37 = arith.constant 1.280000e+02 : f32
    %151 = vector.broadcast %cst_37 : f32 to vector<2x8x1xf32>
    %152 = arith.divf %150, %151 : vector<2x8x1xf32>
    %cst_38 = arith.constant dense<0.000000e+00> : vector<8x1xf32>
    %153 = vector.multi_reduction <add>, %152, %cst_38 [0] : vector<2x8x1xf32> to vector<8x1xf32>
    %154 = vector.shape_cast %153 : vector<8x1xf32> to vector<1x8x1xf32>
    %cst_39 = arith.constant 2.000000e+00 : f32
    %155 = vector.broadcast %cst_39 : f32 to vector<1x8x1xf32>
    %156 = arith.divf %154, %155 : vector<1x8x1xf32>
    %cst_40 = arith.constant 9.99999974E-6 : f32
    %157 = vector.broadcast %cst_40 : f32 to vector<1x8x1xf32>
    %158 = arith.addf %156, %157 : vector<1x8x1xf32>
    %159 = math.rsqrt %158 : vector<1x8x1xf32>
    %160 = vector.broadcast %159 : vector<1x8x1xf32> to vector<2x8x128xf32>
    %161 = arith.mulf %147, %160 : vector<2x8x128xf32>
    %162 = arith.addf %0, %161 : vector<2x8x128xf32>
    %cst_41 = arith.constant 0.000000e+00 : f32
    %163 = vector.broadcast %cst_41 : f32 to vector<2x8x128xf32>
    %164 = arith.maximumf %162, %163 : vector<2x8x128xf32>
    %c0_42 = arith.constant 0 : index
    %c0_43 = arith.constant 0 : index
    %c0_44 = arith.constant 0 : index
    %165 = vector.load %arg3[%c0_42, %c0_43, %c0_44] : memref<2x8x128xf32, #tpu.memory_space<vmem>>, vector<2x8x128xf32>
    tpu.vector_store %arg3[%c0_42, %c0_43, %c0_44], %164 {strides = array<i32>} : memref<2x8x128xf32, #tpu.memory_space<vmem>>, vector<2x8x128xf32>,
    return
  }
}

</mosaic_0001>

<llo_original>
// kernel: tpu_custom_call.1
$region0: #{tpu_custom_call.1}
  #allocation0 [shape = 'u32[]', space=smem, size = 0x4, offset = 0x4, fixed_abs, tag = 'smem constant byte address 0x4 - core index']
  #allocation1 [shape = 'u32[144,128]{1,0:T(1,128)}', space=vmem, size = 0x12000, scoped, tag = 'internal scratch']
  %s0 = inlined_call_operand.hbm [shape: f32[2,8,128], index: 0, kind: input, shape index: {}]
  %s1 = inlined_call_operand.hbm [shape: bf16[128,256], index: 1, kind: input, shape index: {}]
  %s2 = inlined_call_operand.vmem [shape: f32[1,256], index: 2, kind: input, shape index: {}]
  %s3 = inlined_call_operand.hbm [shape: f32[2,8,128], index: 3, kind: output, shape index: {}]
  %s4 = sld [smem:[#allocation0]]
  $region30: #{tpu_custom_call.1} parent=0
    _
  %s6 = ssub.s32 1, %s4
  %s7 = scalar_select 0, %s6, %s4
  $region1: #{tpu_custom_call.1} parent=0
    #allocation2 [shape = 'u8[8192]{0}', space=vmem, size = 0x2000, scoped, tag = 'input window, operand 0, single buffered']
    #allocation3 [shape = 's32[1]{0}', space=sflag, size = 0x4, scoped, tag = 'scoped memory for tpu_custom_call.1']
    #allocation4 [shape = 's32[1]{0}', space=sflag, size = 0x4, scoped, tag = 'scoped memory for tpu_custom_call.1']
    #allocation5 [shape = 'u8[65536]{0}', space=vmem, size = 0x10000, scoped, tag = 'input window, operand 1, single buffered']
    #allocation6 [shape = 's32[1]{0}', space=sflag, size = 0x4, scoped, tag = 'scoped memory for tpu_custom_call.1']
    #allocation7 [shape = 'u8[8192]{0}', space=vmem, size = 0x2000, scoped, tag = 'output window, operand 0, single buffered']
    %8 = vsyncpa [#allocation3], 0
    %9 = vsyncpa [#allocation6], 0
    %10 = vsyncpa [#allocation4], 0
    // Predicated region
    $region2: #{tpu_custom_call.1} parent=1 // pred_check
      _
    $region3: #{tpu_custom_call.1} parent=1 // pred_check_branch
      %12 = sbr.rel (0) target = $region5
    $region4: #{tpu_custom_call.1} parent=1 // pred_region
      %s14 = ssub.s32 256, 256
      %15 = vsyncadd [#allocation3], %s14
      %s16 = sshll.u32 [#allocation2], 4
      %s17 = int_to_ptr.vmem [resolvable:$true] %s16
      %22 = dma.hbm_to_vmem [thread:$0]  %s0, 256, %s17, [#allocation3], 128, 128, 8
    $region5: #{tpu_custom_call.1} parent=1 // pred_fallthru
      _
    // Predicated region
    $region6: #{tpu_custom_call.1} parent=1 // pred_check
      _
    $region7: #{tpu_custom_call.1} parent=1 // pred_check_branch
      %24 = sbr.rel (0) target = $region9
    $region8: #{tpu_custom_call.1} parent=1 // pred_region
      %s26 = ssub.s32 2048, 2048
      %27 = vsyncadd [#allocation6], %s26
      %s28 = sshll.u32 [#allocation5], 4
      %s29 = int_to_ptr.vmem [resolvable:$true] %s28
      %34 = dma.hbm_to_vmem [thread:$0]  %s1, 2048, %s29, [#allocation6], 128, 128, 8
    $region9: #{tpu_custom_call.1} parent=1 // pred_fallthru
      _
    // Predicated region
    $region10: #{tpu_custom_call.1} parent=1 // pred_check
      _
    $region11: #{tpu_custom_call.1} parent=1 // pred_check_branch
      %36 = sbr.rel (0) target = $region13
    $region12: #{tpu_custom_call.1} parent=1 // pred_region
      _
    $region13: #{tpu_custom_call.1} parent=1 // pred_fallthru
      _
    // Predicated region
    $region14: #{tpu_custom_call.1} parent=1 // pred_check
      _
    $region15: #{tpu_custom_call.1} parent=1 // pred_check_branch
      %38 = sbr.rel (0) target = $region17
    $region16: #{tpu_custom_call.1} parent=1 // pred_region
      %39 = dma.done [#allocation3], 256
    $region17: #{tpu_custom_call.1} parent=1 // pred_fallthru
      _
    // Predicated region
    $region18: #{tpu_custom_call.1} parent=1 // pred_check
      _
    $region19: #{tpu_custom_call.1} parent=1 // pred_check_branch
      %41 = sbr.rel (0) target = $region21
    $region20: #{tpu_custom_call.1} parent=1 // pred_region
      %42 = dma.done [#allocation6], 2048
    $region21: #{tpu_custom_call.1} parent=1 // pred_fallthru
      _
    %v44 = vld [vmem:[#allocation2] sm:$0xff]
    %v45 = vld [vmem:[#allocation2 + $0x8] sm:$0xff]
    %v46 = vpack.c.bf16 %v45, %v44
    %v47 = vld [vmem:[#allocation5] sm:$0xff]
    %v48 = vld [vmem:[#allocation5 + $0x8] sm:$0xff]
    %v49 = vld [vmem:[#allocation5 + $0x10] sm:$0xff]
    %v50 = vld [vmem:[#allocation5 + $0x18] sm:$0xff]
    %v51 = vld [vmem:[#allocation5 + $0x20] sm:$0xff]
    %v52 = vld [vmem:[#allocation5 + $0x28] sm:$0xff]
    %v53 = vld [vmem:[#allocation5 + $0x30] sm:$0xff]
    %v54 = vld [vmem:[#allocation5 + $0x38] sm:$0xff]
    %v55 = vld [vmem:[#allocation5 + $0x40] sm:$0xff]
    %v56 = vld [vmem:[#allocation5 + $0x48] sm:$0xff]
    %v57 = vld [vmem:[#allocation5 + $0x50] sm:$0xff]
    %v58 = vld [vmem:[#allocation5 + $0x58] sm:$0xff]
    %v59 = vld [vmem:[#allocation5 + $0x60] sm:$0xff]
    %v60 = vld [vmem:[#allocation5 + $0x68] sm:$0xff]
    %v61 = vld [vmem:[#allocation5 + $0x70] sm:$0xff]
    %v62 = vld [vmem:[#allocation5 + $0x78] sm:$0xff]
    %v63 = vld [vmem:[%s2] sm:$0x3]
    %v65 = vlaneseq
    %v66 = vshrl.u32 %v65, 7
    %v67 = vsub.s32 0, %v66
    %v68 = vrot.slane %v63, %v67
    %v69 = vlaneseq
    %v70 = vshrl.u32 %v69, 7
    %v71 = vsub.s32 1, %v70
    %v72 = vrot.slane %v63, %v71
    %v91 = vunpack.c.l.b16 %v47
    %v92 = vunpack.c.h.b16 %v47
    %v93 = vunpack.c.l.b16 %v48
    %v94 = vunpack.c.h.b16 %v48
    %v95 = vunpack.c.l.b16 %v49
    %v96 = vunpack.c.h.b16 %v49
    %v97 = vunpack.c.l.b16 %v50
    %v98 = vunpack.c.h.b16 %v50
    %v99 = vunpack.c.l.b16 %v51
    %v100 = vunpack.c.h.b16 %v51
    %v101 = vunpack.c.l.b16 %v52
    %v102 = vunpack.c.h.b16 %v52
    %v103 = vunpack.c.l.b16 %v53
    %v104 = vunpack.c.h.b16 %v53
    %v105 = vunpack.c.l.b16 %v54
    %v106 = vunpack.c.h.b16 %v54
    %v107 = vunpack.c.l.b16 %v55
    %v108 = vunpack.c.h.b16 %v55
    %v109 = vunpack.c.l.b16 %v56
    %v110 = vunpack.c.h.b16 %v56
    %v111 = vunpack.c.l.b16 %v57
    %v112 = vunpack.c.h.b16 %v57
    %v113 = vunpack.c.l.b16 %v58
    %v114 = vunpack.c.h.b16 %v58
    %v115 = vunpack.c.l.b16 %v59
    %v116 = vunpack.c.h.b16 %v59
    %v117 = vunpack.c.l.b16 %v60
    %v118 = vunpack.c.h.b16 %v60
    %v119 = vunpack.c.l.b16 %v61
    %v120 = vunpack.c.h.b16 %v61
    %v121 = vunpack.c.l.b16 %v62
    %v122 = vunpack.c.h.b16 %v62
    %v123 = vpack.c.b16 %v93, %v91
    %v124 = vpack.c.b16 %v94, %v92
    %v125 = vpack.c.b16 %v97, %v95
    %v126 = vpack.c.b16 %v98, %v96
    %v127 = vpack.c.b16 %v101, %v99
    %v128 = vpack.c.b16 %v102, %v100
    %v129 = vpack.c.b16 %v105, %v103
    %v130 = vpack.c.b16 %v106, %v104
    %v131 = vpack.c.b16 %v109, %v107
    %v132 = vpack.c.b16 %v110, %v108
    %v133 = vpack.c.b16 %v113, %v111
    %v134 = vpack.c.b16 %v114, %v112
    %v135 = vpack.c.b16 %v117, %v115
    %v136 = vpack.c.b16 %v118, %v116
    %v137 = vpack.c.b16 %v121, %v119
    %v138 = vpack.c.b16 %v122, %v120
    %155 = vmatprep.subr.bf16.mxu0 %v138
    %156 = vmatpush1.bf16.msra.mxu0 %v137
    %157 = vmatprep.subr.bf16.mxu0 %v136
    %158 = vmatpush1.bf16.msra.mxu0 %v135
    %159 = vmatprep.subr.bf16.mxu0 %v134
    %160 = vmatpush1.bf16.msra.mxu0 %v133
    %161 = vmatprep.subr.bf16.mxu0 %v132
    %162 = vmatpush1.bf16.msra.mxu0 %v131
    %163 = vmatprep.subr.bf16.mxu0 %v130
    %164 = vmatpush1.bf16.msra.mxu0 %v129
    %165 = vmatprep.subr.bf16.mxu0 %v128
    %166 = vmatpush1.bf16.msra.mxu0 %v127
    %167 = vmatprep.subr.bf16.mxu0 %v126
    %168 = vmatpush1.bf16.msra.mxu0 %v125
    %169 = vmatprep.subr.bf16.mxu0 %v124
    %170 = vmatpush1.bf16.msra.mxu0 %v123
    %171 = vmatprep.subr.bf16.mxu0 0
    %172 = vmatpush2.bf16.msra.mxu0 0
    %173 = vmatprep.subr.bf16.mxu0 0
    %174 = vmatpush2.bf16.msra.mxu0 0
    %175 = vmatprep.subr.bf16.mxu0 0
    %176 = vmatpush2.bf16.msra.mxu0 0
    %177 = vmatprep.subr.bf16.mxu0 0
    %178 = vmatpush2.bf16.msra.mxu0 0
    %179 = vmatprep.subr.bf16.mxu0 0
    %180 = vmatpush2.bf16.msra.mxu0 0
    %181 = vmatprep.subr.bf16.mxu0 0
    %182 = vmatpush2.bf16.msra.mxu0 0
    %183 = vmatprep.subr.bf16.mxu0 0
    %184 = vmatpush2.bf16.msra.mxu0 0
    %185 = vmatprep.subr.bf16.mxu0 0
    %186 = vmatpush2.bf16.msra.mxu0 0
    %187 = vmatprep.mubr.bf16.mxu0 0
    %188 = vmatmul.mubr.bf16.gmra.mxu0 %v46
    %v189 = vpop.f32.mrf.mxu0
    %v190 = vadd.f32 %v68, %v189
    %v191 = vpop.f32.mrf.mxu0
    %v192 = vadd.f32 %v72, %v191
    %v193 = vpop.f32.mrf.mxu0
    %v194 = vadd.f32 %v68, %v193
    %v195 = vpop.f32.mrf.mxu0
    %v196 = vadd.f32 %v72, %v195
    %197 = vdwg.mxu0
    %198 = vmatprep.subr.mxu0 0.0
    %199 = vmatpush1.xpose.msra.mxu0 0.0
    %200 = vmatprep.subr.mxu0 0.0
    %201 = vmatpush1.xpose.msra.mxu0 0.0
    %202 = vmatprep.subr.mxu0 0.0
    %203 = vmatpush1.xpose.msra.mxu0 0.0
    %204 = vmatprep.subr.mxu0 0.0
    %205 = vmatpush1.xpose.msra.mxu0 0.0
    %206 = vmatprep.subr.mxu0 0.0
    %207 = vmatpush1.xpose.msra.mxu0 0.0
    %208 = vmatprep.subr.mxu0 0.0
    %209 = vmatpush1.xpose.msra.mxu0 0.0
    %210 = vmatprep.subr.mxu0 0.0
    %211 = vmatpush1.xpose.msra.mxu0 0.0
    %212 = vmatprep.subr.mxu0 0.0
    %213 = vmatpush1.xpose.msra.mxu0 0.0
    %214 = vmatprep.subr.mxu0 0.0
    %215 = vmatpush1.xpose.msra.mxu0 0.0
    %216 = vmatprep.subr.mxu0 0.0
    %217 = vmatpush1.xpose.msra.mxu0 0.0
    %218 = vmatprep.subr.mxu0 0.0
    %219 = vmatpush1.xpose.msra.mxu0 0.0
    %220 = vmatprep.subr.mxu0 0.0
    %221 = vmatpush1.xpose.msra.mxu0 0.0
    %222 = vmatprep.subr.mxu0 0.0
    %223 = vmatpush1.xpose.msra.mxu0 0.0
    %224 = vmatprep.subr.mxu0 0.0
    %225 = vmatpush1.xpose.msra.mxu0 0.0
    %226 = vmatprep.subr.mxu0 0.0
    %227 = vmatpush1.xpose.msra.mxu0 0.0
    %228 = vmatprep.subr.mxu0 0.0
    %v229 = vand.u32 %v44, 4294901760
    %230 = vmatpush1.xpose.msra.mxu0 %v229
    %231 = vmatprep.subr.mxu0 0.0
    %232 = vmatpush2.xpose.msra.mxu0 0.0
    %233 = vmatprep.subr.mxu0 0.0
    %234 = vmatpush2.xpose.msra.mxu0 0.0
    %235 = vmatprep.subr.mxu0 0.0
    %236 = vmatpush2.xpose.msra.mxu0 0.0
    %237 = vmatprep.subr.mxu0 0.0
    %238 = vmatpush2.xpose.msra.mxu0 0.0
    %239 = vmatprep.subr.mxu0 0.0
    %240 = vmatpush2.xpose.msra.mxu0 0.0
    %241 = vmatprep.subr.mxu0 0.0
    %242 = vmatpush2.xpose.msra.mxu0 0.0
    %243 = vmatprep.subr.mxu0 0.0
    %244 = vmatpush2.xpose.msra.mxu0 0.0
    %245 = vmatprep.subr.mxu0 0.0
    %246 = vmatpush2.xpose.msra.mxu0 0.0
    %247 = vmatprep.subr.mxu0 0.0
    %248 = vmatpush2.xpose.msra.mxu0 0.0
    %249 = vmatprep.subr.mxu0 0.0
    %250 = vmatpush2.xpose.msra.mxu0 0.0
    %251 = vmatprep.subr.mxu0 0.0
    %252 = vmatpush2.xpose.msra.mxu0 0.0
    %253 = vmatprep.subr.mxu0 0.0
    %254 = vmatpush2.xpose.msra.mxu0 0.0
    %255 = vmatprep.subr.mxu0 0.0
    %256 = vmatpush2.xpose.msra.mxu0 0.0
    %257 = vmatprep.subr.mxu0 0.0
    %258 = vmatpush2.xpose.msra.mxu0 0.0
    %259 = vmatprep.subr.mxu0 0.0
    %260 = vmatpush2.xpose.msra.mxu0 0.0
    %261 = vmatprep.subr.mxu0 0.0
    %262 = vmatpush2.xpose.msra.mxu0 0.0
    %263 = vmatprep.mubr.f32.mxu0 0.0
    %v264 = vand.u32 %v44, 4294901760
    %v265 = vsub.f32 %v44, %v264
    %v266 = vand.u32 %v265, 4294901760
    %v267 = vsub.f32 %v265, %v266
    %v268 = vand.u32 %v267, 4294901760
    %269 = vmatmul.mubr.f32.gmra.mxu0 %v268
    %v270 = vpop.f32.mrf.mxu0
    %v271 = vadd.f32 0.0, %v270
    %v272 = vpop.f32.mrf.mxu0
    %273 = vdwg.mxu0
    %274 = vmatprep.subr.mxu0 0.0
    %275 = vmatpush1.xpose.msra.mxu0 0.0
    %276 = vmatprep.subr.mxu0 0.0
    %277 = vmatpush1.xpose.msra.mxu0 0.0
    %278 = vmatprep.subr.mxu0 0.0
    %279 = vmatpush1.xpose.msra.mxu0 0.0
    %280 = vmatprep.subr.mxu0 0.0
    %281 = vmatpush1.xpose.msra.mxu0 0.0
    %282 = vmatprep.subr.mxu0 0.0
    %283 = vmatpush1.xpose.msra.mxu0 0.0
    %284 = vmatprep.subr.mxu0 0.0
    %285 = vmatpush1.xpose.msra.mxu0 0.0
    %286 = vmatprep.subr.mxu0 0.0
    %287 = vmatpush1.xpose.msra.mxu0 0.0
    %288 = vmatprep.subr.mxu0 0.0
    %289 = vmatpush1.xpose.msra.mxu0 0.0
    %290 = vmatprep.subr.mxu0 0.0
    %291 = vmatpush1.xpose.msra.mxu0 0.0
    %292 = vmatprep.subr.mxu0 0.0
    %293 = vmatpush1.xpose.msra.mxu0 0.0
    %294 = vmatprep.subr.mxu0 0.0
    %295 = vmatpush1.xpose.msra.mxu0 0.0
    %296 = vmatprep.subr.mxu0 0.0
    %297 = vmatpush1.xpose.msra.mxu0 0.0
    %298 = vmatprep.subr.mxu0 0.0
    %299 = vmatpush1.xpose.msra.mxu0 0.0
    %300 = vmatprep.subr.mxu0 0.0
    %301 = vmatpush1.xpose.msra.mxu0 0.0
    %302 = vmatprep.subr.mxu0 0.0
    %303 = vmatpush1.xpose.msra.mxu0 0.0
    %304 = vmatprep.subr.mxu0 0.0
    %v305 = vand.u32 %v44, 4294901760
    %v306 = vsub.f32 %v44, %v305
    %v307 = vand.u32 %v306, 4294901760
    %v308 = vsub.f32 %v306, %v307
    %v309 = vand.u32 %v308, 4294901760
    %310 = vmatpush1.xpose.msra.mxu0 %v309
    %311 = vmatprep.subr.mxu0 0.0
    %312 = vmatpush2.xpose.msra.mxu0 0.0
    %313 = vmatprep.subr.mxu0 0.0
    %314 = vmatpush2.xpose.msra.mxu0 0.0
    %315 = vmatprep.subr.mxu0 0.0
    %316 = vmatpush2.xpose.msra.mxu0 0.0
    %317 = vmatprep.subr.mxu0 0.0
    %318 = vmatpush2.xpose.msra.mxu0 0.0
    %319 = vmatprep.subr.mxu0 0.0
    %320 = vmatpush2.xpose.msra.mxu0 0.0
    %321 = vmatprep.subr.mxu0 0.0
    %322 = vmatpush2.xpose.msra.mxu0 0.0
    %323 = vmatprep.subr.mxu0 0.0
    %324 = vmatpush2.xpose.msra.mxu0 0.0
    %325 = vmatprep.subr.mxu0 0.0
    %326 = vmatpush2.xpose.msra.mxu0 0.0
    %327 = vmatprep.subr.mxu0 0.0
    %328 = vmatpush2.xpose.msra.mxu0 0.0
    %329 = vmatprep.subr.mxu0 0.0
    %330 = vmatpush2.xpose.msra.mxu0 0.0
    %331 = vmatprep.subr.mxu0 0.0
    %332 = vmatpush2.xpose.msra.mxu0 0.0
    %333 = vmatprep.subr.mxu0 0.0
    %334 = vmatpush2.xpose.msra.mxu0 0.0
    %335 = vmatprep.subr.mxu0 0.0
    %336 = vmatpush2.xpose.msra.mxu0 0.0
    %337 = vmatprep.subr.mxu0 0.0
    %338 = vmatpush2.xpose.msra.mxu0 0.0
    %339 = vmatprep.subr.mxu0 0.0
    %340 = vmatpush2.xpose.msra.mxu0 0.0
    %341 = vmatprep.subr.mxu0 0.0
    %342 = vmatpush2.xpose.msra.mxu0 0.0
    %343 = vmatprep.mubr.f32.mxu0 0.0
    %v344 = vand.u32 %v44, 4294901760
    %345 = vmatmul.mubr.f32.gmra.mxu0 %v344
    %v346 = vpop.f32.mrf.mxu0
    %v347 = vadd.f32 %v271, %v346
    %v348 = vpop.f32.mrf.mxu0
    %349 = vdwg.mxu0
    %350 = vmatprep.subr.mxu0 0.0
    %351 = vmatpush1.xpose.msra.mxu0 0.0
    %352 = vmatprep.subr.mxu0 0.0
    %353 = vmatpush1.xpose.msra.mxu0 0.0
    %354 = vmatprep.subr.mxu0 0.0
    %355 = vmatpush1.xpose.msra.mxu0 0.0
    %356 = vmatprep.subr.mxu0 0.0
    %357 = vmatpush1.xpose.msra.mxu0 0.0
    %358 = vmatprep.subr.mxu0 0.0
    %359 = vmatpush1.xpose.msra.mxu0 0.0
    %360 = vmatprep.subr.mxu0 0.0
    %361 = vmatpush1.xpose.msra.mxu0 0.0
    %362 = vmatprep.subr.mxu0 0.0
    %363 = vmatpush1.xpose.msra.mxu0 0.0
    %364 = vmatprep.subr.mxu0 0.0
    %365 = vmatpush1.xpose.msra.mxu0 0.0
    %366 = vmatprep.subr.mxu0 0.0
    %367 = vmatpush1.xpose.msra.mxu0 0.0
    %368 = vmatprep.subr.mxu0 0.0
    %369 = vmatpush1.xpose.msra.mxu0 0.0
    %370 = vmatprep.subr.mxu0 0.0
    %371 = vmatpush1.xpose.msra.mxu0 0.0
    %372 = vmatprep.subr.mxu0 0.0
    %373 = vmatpush1.xpose.msra.mxu0 0.0
    %374 = vmatprep.subr.mxu0 0.0
    %375 = vmatpush1.xpose.msra.mxu0 0.0
    %376 = vmatprep.subr.mxu0 0.0
    %377 = vmatpush1.xpose.msra.mxu0 0.0
    %378 = vmatprep.subr.mxu0 0.0
    %379 = vmatpush1.xpose.msra.mxu0 0.0
    %380 = vmatprep.subr.mxu0 0.0
    %v381 = vand.u32 %v44, 4294901760
    %v382 = vsub.f32 %v44, %v381
    %383 = vmatpush1.xpose.msra.mxu0 %v382
    %384 = vmatprep.subr.mxu0 0.0
    %385 = vmatpush2.xpose.msra.mxu0 0.0
    %386 = vmatprep.subr.mxu0 0.0
    %387 = vmatpush2.xpose.msra.mxu0 0.0
    %388 = vmatprep.subr.mxu0 0.0
    %389 = vmatpush2.xpose.msra.mxu0 0.0
    %390 = vmatprep.subr.mxu0 0.0
    %391 = vmatpush2.xpose.msra.mxu0 0.0
    %392 = vmatprep.subr.mxu0 0.0
    %393 = vmatpush2.xpose.msra.mxu0 0.0
    %394 = vmatprep.subr.mxu0 0.0
    %395 = vmatpush2.xpose.msra.mxu0 0.0
    %396 = vmatprep.subr.mxu0 0.0
    %397 = vmatpush2.xpose.msra.mxu0 0.0
    %398 = vmatprep.subr.mxu0 0.0
    %399 = vmatpush2.xpose.msra.mxu0 0.0
    %400 = vmatprep.subr.mxu0 0.0
    %401 = vmatpush2.xpose.msra.mxu0 0.0
    %402 = vmatprep.subr.mxu0 0.0
    %403 = vmatpush2.xpose.msra.mxu0 0.0
    %404 = vmatprep.subr.mxu0 0.0
    %405 = vmatpush2.xpose.msra.mxu0 0.0
    %406 = vmatprep.subr.mxu0 0.0
    %407 = vmatpush2.xpose.msra.mxu0 0.0
    %408 = vmatprep.subr.mxu0 0.0
    %409 = vmatpush2.xpose.msra.mxu0 0.0
    %410 = vmatprep.subr.mxu0 0.0
    %411 = vmatpush2.xpose.msra.mxu0 0.0
    %412 = vmatprep.subr.mxu0 0.0
    %413 = vmatpush2.xpose.msra.mxu0 0.0
    %414 = vmatprep.subr.mxu0 0.0
    %415 = vmatpush2.xpose.msra.mxu0 0.0
    %416 = vmatprep.mubr.f32.mxu0 0.0
    %v417 = vand.u32 %v44, 4294901760
    %v418 = vsub.f32 %v44, %v417
    %419 = vmatmul.mubr.f32.gmra.mxu0 %v418
    %v420 = vpop.f32.mrf.mxu0
    %v421 = vadd.f32 %v347, %v420
    %v422 = vpop.f32.mrf.mxu0
    %423 = vdwg.mxu0
    %424 = vmatprep.subr.mxu0 0.0
    %425 = vmatpush1.xpose.msra.mxu0 0.0
    %426 = vmatprep.subr.mxu0 0.0
    %427 = vmatpush1.xpose.msra.mxu0 0.0
    %428 = vmatprep.subr.mxu0 0.0
    %429 = vmatpush1.xpose.msra.mxu0 0.0
    %430 = vmatprep.subr.mxu0 0.0
    %431 = vmatpush1.xpose.msra.mxu0 0.0
    %432 = vmatprep.subr.mxu0 0.0
    %433 = vmatpush1.xpose.msra.mxu0 0.0
    %434 = vmatprep.subr.mxu0 0.0
    %435 = vmatpush1.xpose.msra.mxu0 0.0
    %436 = vmatprep.subr.mxu0 0.0
    %437 = vmatpush1.xpose.msra.mxu0 0.0
    %438 = vmatprep.subr.mxu0 0.0
    %439 = vmatpush1.xpose.msra.mxu0 0.0
    %440 = vmatprep.subr.mxu0 0.0
    %441 = vmatpush1.xpose.msra.mxu0 0.0
    %442 = vmatprep.subr.mxu0 0.0
    %443 = vmatpush1.xpose.msra.mxu0 0.0
    %444 = vmatprep.subr.mxu0 0.0
    %445 = vmatpush1.xpose.msra.mxu0 0.0
    %446 = vmatprep.subr.mxu0 0.0
    %447 = vmatpush1.xpose.msra.mxu0 0.0
    %448 = vmatprep.subr.mxu0 0.0
    %449 = vmatpush1.xpose.msra.mxu0 0.0
    %450 = vmatprep.subr.mxu0 0.0
    %451 = vmatpush1.xpose.msra.mxu0 0.0
    %452 = vmatprep.subr.mxu0 0.0
    %453 = vmatpush1.xpose.msra.mxu0 0.0
    %454 = vmatprep.subr.mxu0 0.0
    %v455 = vand.u32 %v44, 4294901760
    %456 = vmatpush1.xpose.msra.mxu0 %v455
    %457 = vmatprep.subr.mxu0 0.0
    %458 = vmatpush2.xpose.msra.mxu0 0.0
    %459 = vmatprep.subr.mxu0 0.0
    %460 = vmatpush2.xpose.msra.mxu0 0.0
    %461 = vmatprep.subr.mxu0 0.0
    %462 = vmatpush2.xpose.msra.mxu0 0.0
    %463 = vmatprep.subr.mxu0 0.0
    %464 = vmatpush2.xpose.msra.mxu0 0.0
    %465 = vmatprep.subr.mxu0 0.0
    %466 = vmatpush2.xpose.msra.mxu0 0.0
    %467 = vmatprep.subr.mxu0 0.0
    %468 = vmatpush2.xpose.msra.mxu0 0.0
    %469 = vmatprep.subr.mxu0 0.0
    %470 = vmatpush2.xpose.msra.mxu0 0.0
    %471 = vmatprep.subr.mxu0 0.0
    %472 = vmatpush2.xpose.msra.mxu0 0.0
    %473 = vmatprep.subr.mxu0 0.0
    %474 = vmatpush2.xpose.msra.mxu0 0.0
    %475 = vmatprep.subr.mxu0 0.0
    %476 = vmatpush2.xpose.msra.mxu0 0.0
    %477 = vmatprep.subr.mxu0 0.0
    %478 = vmatpush2.xpose.msra.mxu0 0.0
    %479 = vmatprep.subr.mxu0 0.0
    %480 = vmatpush2.xpose.msra.mxu0 0.0
    %481 = vmatprep.subr.mxu0 0.0
    %482 = vmatpush2.xpose.msra.mxu0 0.0
    %483 = vmatprep.subr.mxu0 0.0
    %484 = vmatpush2.xpose.msra.mxu0 0.0
    %485 = vmatprep.subr.mxu0 0.0
    %486 = vmatpush2.xpose.msra.mxu0 0.0
    %487 = vmatprep.subr.mxu0 0.0
    %488 = vmatpush2.xpose.msra.mxu0 0.0
    %489 = vmatprep.mubr.f32.mxu0 0.0
    %v490 = vand.u32 %v44, 4294901760
    %v491 = vsub.f32 %v44, %v490
    %v492 = vand.u32 %v491, 4294901760
    %493 = vmatmul.mubr.f32.gmra.mxu0 %v492
    %v494 = vpop.f32.mrf.mxu0
    %v495 = vadd.f32 %v421, %v494
    %v496 = vpop.f32.mrf.mxu0
    %497 = vdwg.mxu0
    %498 = vmatprep.subr.mxu0 0.0
    %499 = vmatpush1.xpose.msra.mxu0 0.0
    %500 = vmatprep.subr.mxu0 0.0
    %501 = vmatpush1.xpose.msra.mxu0 0.0
    %502 = vmatprep.subr.mxu0 0.0
    %503 = vmatpush1.xpose.msra.mxu0 0.0
    %504 = vmatprep.subr.mxu0 0.0
    %505 = vmatpush1.xpose.msra.mxu0 0.0
    %506 = vmatprep.subr.mxu0 0.0
    %507 = vmatpush1.xpose.msra.mxu0 0.0
    %508 = vmatprep.subr.mxu0 0.0
    %509 = vmatpush1.xpose.msra.mxu0 0.0
    %510 = vmatprep.subr.mxu0 0.0
    %511 = vmatpush1.xpose.msra.mxu0 0.0
    %512 = vmatprep.subr.mxu0 0.0
    %513 = vmatpush1.xpose.msra.mxu0 0.0
    %514 = vmatprep.subr.mxu0 0.0
    %515 = vmatpush1.xpose.msra.mxu0 0.0
    %516 = vmatprep.subr.mxu0 0.0
    %517 = vmatpush1.xpose.msra.mxu0 0.0
    %518 = vmatprep.subr.mxu0 0.0
    %519 = vmatpush1.xpose.msra.mxu0 0.0
    %520 = vmatprep.subr.mxu0 0.0
    %521 = vmatpush1.xpose.msra.mxu0 0.0
    %522 = vmatprep.subr.mxu0 0.0
    %523 = vmatpush1.xpose.msra.mxu0 0.0
    %524 = vmatprep.subr.mxu0 0.0
    %525 = vmatpush1.xpose.msra.mxu0 0.0
    %526 = vmatprep.subr.mxu0 0.0
    %527 = vmatpush1.xpose.msra.mxu0 0.0
    %528 = vmatprep.subr.mxu0 0.0
    %v529 = vand.u32 %v44, 4294901760
    %v530 = vsub.f32 %v44, %v529
    %v531 = vand.u32 %v530, 4294901760
    %532 = vmatpush1.xpose.msra.mxu0 %v531
    %533 = vmatprep.subr.mxu0 0.0
    %534 = vmatpush2.xpose.msra.mxu0 0.0
    %535 = vmatprep.subr.mxu0 0.0
    %536 = vmatpush2.xpose.msra.mxu0 0.0
    %537 = vmatprep.subr.mxu0 0.0
    %538 = vmatpush2.xpose.msra.mxu0 0.0
    %539 = vmatprep.subr.mxu0 0.0
    %540 = vmatpush2.xpose.msra.mxu0 0.0
    %541 = vmatprep.subr.mxu0 0.0
    %542 = vmatpush2.xpose.msra.mxu0 0.0
    %543 = vmatprep.subr.mxu0 0.0
    %544 = vmatpush2.xpose.msra.mxu0 0.0
    %545 = vmatprep.subr.mxu0 0.0
    %546 = vmatpush2.xpose.msra.mxu0 0.0
    %547 = vmatprep.subr.mxu0 0.0
    %548 = vmatpush2.xpose.msra.mxu0 0.0
    %549 = vmatprep.subr.mxu0 0.0
    %550 = vmatpush2.xpose.msra.mxu0 0.0
    %551 = vmatprep.subr.mxu0 0.0
    %552 = vmatpush2.xpose.msra.mxu0 0.0
    %553 = vmatprep.subr.mxu0 0.0
    %554 = vmatpush2.xpose.msra.mxu0 0.0
    %555 = vmatprep.subr.mxu0 0.0
    %556 = vmatpush2.xpose.msra.mxu0 0.0
    %557 = vmatprep.subr.mxu0 0.0
    %558 = vmatpush2.xpose.msra.mxu0 0.0
    %559 = vmatprep.subr.mxu0 0.0
    %560 = vmatpush2.xpose.msra.mxu0 0.0
    %561 = vmatprep.subr.mxu0 0.0
    %562 = vmatpush2.xpose.msra.mxu0 0.0
    %563 = vmatprep.subr.mxu0 0.0
    %564 = vmatpush2.xpose.msra.mxu0 0.0
    %565 = vmatprep.mubr.f32.mxu0 0.0
    %v566 = vand.u32 %v44, 4294901760
    %567 = vmatmul.mubr.f32.gmra.mxu0 %v566
    %v568 = vpop.f32.mrf.mxu0
    %v569 = vadd.f32 %v495, %v568
    %v570 = vpop.f32.mrf.mxu0
    %571 = vdwg.mxu0
    %572 = vmatprep.subr.mxu0 0.0
    %573 = vmatpush1.xpose.msra.mxu0 0.0
    %574 = vmatprep.subr.mxu0 0.0
    %575 = vmatpush1.xpose.msra.mxu0 0.0
    %576 = vmatprep.subr.mxu0 0.0
    %577 = vmatpush1.xpose.msra.mxu0 0.0
    %578 = vmatprep.subr.mxu0 0.0
    %579 = vmatpush1.xpose.msra.mxu0 0.0
    %580 = vmatprep.subr.mxu0 0.0
    %581 = vmatpush1.xpose.msra.mxu0 0.0
    %582 = vmatprep.subr.mxu0 0.0
    %583 = vmatpush1.xpose.msra.mxu0 0.0
    %584 = vmatprep.subr.mxu0 0.0
    %585 = vmatpush1.xpose.msra.mxu0 0.0
    %586 = vmatprep.subr.mxu0 0.0
    %587 = vmatpush1.xpose.msra.mxu0 0.0
    %588 = vmatprep.subr.mxu0 0.0
    %589 = vmatpush1.xpose.msra.mxu0 0.0
    %590 = vmatprep.subr.mxu0 0.0
    %591 = vmatpush1.xpose.msra.mxu0 0.0
    %592 = vmatprep.subr.mxu0 0.0
    %593 = vmatpush1.xpose.msra.mxu0 0.0
    %594 = vmatprep.subr.mxu0 0.0
    %595 = vmatpush1.xpose.msra.mxu0 0.0
    %596 = vmatprep.subr.mxu0 0.0
    %597 = vmatpush1.xpose.msra.mxu0 0.0
    %598 = vmatprep.subr.mxu0 0.0
    %599 = vmatpush1.xpose.msra.mxu0 0.0
    %600 = vmatprep.subr.mxu0 0.0
    %601 = vmatpush1.xpose.msra.mxu0 0.0
    %602 = vmatprep.subr.mxu0 0.0
    %v603 = vand.u32 %v44, 4294901760
    %604 = vmatpush1.xpose.msra.mxu0 %v603
    %605 = vmatprep.subr.mxu0 0.0
    %606 = vmatpush2.xpose.msra.mxu0 0.0
    %607 = vmatprep.subr.mxu0 0.0
    %608 = vmatpush2.xpose.msra.mxu0 0.0
    %609 = vmatprep.subr.mxu0 0.0
    %610 = vmatpush2.xpose.msra.mxu0 0.0
    %611 = vmatprep.subr.mxu0 0.0
    %612 = vmatpush2.xpose.msra.mxu0 0.0
    %613 = vmatprep.subr.mxu0 0.0
    %614 = vmatpush2.xpose.msra.mxu0 0.0
    %615 = vmatprep.subr.mxu0 0.0
    %616 = vmatpush2.xpose.msra.mxu0 0.0
    %617 = vmatprep.subr.mxu0 0.0
    %618 = vmatpush2.xpose.msra.mxu0 0.0
    %619 = vmatprep.subr.mxu0 0.0
    %620 = vmatpush2.xpose.msra.mxu0 0.0
    %621 = vmatprep.subr.mxu0 0.0
    %622 = vmatpush2.xpose.msra.mxu0 0.0
    %623 = vmatprep.subr.mxu0 0.0
    %624 = vmatpush2.xpose.msra.mxu0 0.0
    %625 = vmatprep.subr.mxu0 0.0
    %626 = vmatpush2.xpose.msra.mxu0 0.0
    %627 = vmatprep.subr.mxu0 0.0
    %628 = vmatpush2.xpose.msra.mxu0 0.0
    %629 = vmatprep.subr.mxu0 0.0
    %630 = vmatpush2.xpose.msra.mxu0 0.0
    %631 = vmatprep.subr.mxu0 0.0
    %632 = vmatpush2.xpose.msra.mxu0 0.0
    %633 = vmatprep.subr.mxu0 0.0
    %634 = vmatpush2.xpose.msra.mxu0 0.0
    %635 = vmatprep.subr.mxu0 0.0
    %636 = vmatpush2.xpose.msra.mxu0 0.0
    %637 = vmatprep.mubr.f32.mxu0 0.0
    %v638 = vand.u32 %v44, 4294901760
    %639 = vmatmul.mubr.f32.gmra.mxu0 %v638
    %v640 = vpop.f32.mrf.mxu0
    %v641 = vadd.f32 %v569, %v640
    %v642 = vpop.f32.mrf.mxu0
    %643 = vdwg.mxu0
    %644 = vmatprep.subr.mxu0 0.0
    %645 = vmatpush1.xpose.msra.mxu0 0.0
    %646 = vmatprep.subr.mxu0 0.0
    %647 = vmatpush1.xpose.msra.mxu0 0.0
    %648 = vmatprep.subr.mxu0 0.0
    %649 = vmatpush1.xpose.msra.mxu0 0.0
    %650 = vmatprep.subr.mxu0 0.0
    %651 = vmatpush1.xpose.msra.mxu0 0.0
    %652 = vmatprep.subr.mxu0 0.0
    %653 = vmatpush1.xpose.msra.mxu0 0.0
    %654 = vmatprep.subr.mxu0 0.0
    %655 = vmatpush1.xpose.msra.mxu0 0.0
    %656 = vmatprep.subr.mxu0 0.0
    %657 = vmatpush1.xpose.msra.mxu0 0.0
    %658 = vmatprep.subr.mxu0 0.0
    %659 = vmatpush1.xpose.msra.mxu0 0.0
    %660 = vmatprep.subr.mxu0 0.0
    %661 = vmatpush1.xpose.msra.mxu0 0.0
    %662 = vmatprep.subr.mxu0 0.0
    %663 = vmatpush1.xpose.msra.mxu0 0.0
    %664 = vmatprep.subr.mxu0 0.0
    %665 = vmatpush1.xpose.msra.mxu0 0.0
    %666 = vmatprep.subr.mxu0 0.0
    %667 = vmatpush1.xpose.msra.mxu0 0.0
    %668 = vmatprep.subr.mxu0 0.0
    %669 = vmatpush1.xpose.msra.mxu0 0.0
    %670 = vmatprep.subr.mxu0 0.0
    %671 = vmatpush1.xpose.msra.mxu0 0.0
    %672 = vmatprep.subr.mxu0 0.0
    %673 = vmatpush1.xpose.msra.mxu0 0.0
    %674 = vmatprep.subr.mxu0 0.0
    %v675 = vand.u32 %v45, 4294901760
    %676 = vmatpush1.xpose.msra.mxu0 %v675
    %677 = vmatprep.subr.mxu0 0.0
    %678 = vmatpush2.xpose.msra.mxu0 0.0
    %679 = vmatprep.subr.mxu0 0.0
    %680 = vmatpush2.xpose.msra.mxu0 0.0
    %681 = vmatprep.subr.mxu0 0.0
    %682 = vmatpush2.xpose.msra.mxu0 0.0
    %683 = vmatprep.subr.mxu0 0.0
    %684 = vmatpush2.xpose.msra.mxu0 0.0
    %685 = vmatprep.subr.mxu0 0.0
    %686 = vmatpush2.xpose.msra.mxu0 0.0
    %687 = vmatprep.subr.mxu0 0.0
    %688 = vmatpush2.xpose.msra.mxu0 0.0
    %689 = vmatprep.subr.mxu0 0.0
    %690 = vmatpush2.xpose.msra.mxu0 0.0
    %691 = vmatprep.subr.mxu0 0.0
    %692 = vmatpush2.xpose.msra.mxu0 0.0
    %693 = vmatprep.subr.mxu0 0.0
    %694 = vmatpush2.xpose.msra.mxu0 0.0
    %695 = vmatprep.subr.mxu0 0.0
    %696 = vmatpush2.xpose.msra.mxu0 0.0
    %697 = vmatprep.subr.mxu0 0.0
    %698 = vmatpush2.xpose.msra.mxu0 0.0
    %699 = vmatprep.subr.mxu0 0.0
    %700 = vmatpush2.xpose.msra.mxu0 0.0
    %701 = vmatprep.subr.mxu0 0.0
    %702 = vmatpush2.xpose.msra.mxu0 0.0
    %703 = vmatprep.subr.mxu0 0.0
    %704 = vmatpush2.xpose.msra.mxu0 0.0
    %705 = vmatprep.subr.mxu0 0.0
    %706 = vmatpush2.xpose.msra.mxu0 0.0
    %707 = vmatprep.subr.mxu0 0.0
    %708 = vmatpush2.xpose.msra.mxu0 0.0
    %709 = vmatprep.mubr.f32.mxu0 0.0
    %v710 = vand.u32 %v45, 4294901760
    %v711 = vsub.f32 %v45, %v710
    %v712 = vand.u32 %v711, 4294901760
    %v713 = vsub.f32 %v711, %v712
    %v714 = vand.u32 %v713, 4294901760
    %715 = vmatmul.mubr.f32.gmra.mxu0 %v714
    %v716 = vpop.f32.mrf.mxu0
    %v717 = vadd.f32 0.0, %v716
    %v718 = vpop.f32.mrf.mxu0
    %719 = vdwg.mxu0
    %720 = vmatprep.subr.mxu0 0.0
    %721 = vmatpush1.xpose.msra.mxu0 0.0
    %722 = vmatprep.subr.mxu0 0.0
    %723 = vmatpush1.xpose.msra.mxu0 0.0
    %724 = vmatprep.subr.mxu0 0.0
    %725 = vmatpush1.xpose.msra.mxu0 0.0
    %726 = vmatprep.subr.mxu0 0.0
    %727 = vmatpush1.xpose.msra.mxu0 0.0
    %728 = vmatprep.subr.mxu0 0.0
    %729 = vmatpush1.xpose.msra.mxu0 0.0
    %730 = vmatprep.subr.mxu0 0.0
    %731 = vmatpush1.xpose.msra.mxu0 0.0
    %732 = vmatprep.subr.mxu0 0.0
    %733 = vmatpush1.xpose.msra.mxu0 0.0
    %734 = vmatprep.subr.mxu0 0.0
    %735 = vmatpush1.xpose.msra.mxu0 0.0
    %736 = vmatprep.subr.mxu0 0.0
    %737 = vmatpush1.xpose.msra.mxu0 0.0
    %738 = vmatprep.subr.mxu0 0.0
    %739 = vmatpush1.xpose.msra.mxu0 0.0
    %740 = vmatprep.subr.mxu0 0.0
    %741 = vmatpush1.xpose.msra.mxu0 0.0
    %742 = vmatprep.subr.mxu0 0.0
    %743 = vmatpush1.xpose.msra.mxu0 0.0
    %744 = vmatprep.subr.mxu0 0.0
    %745 = vmatpush1.xpose.msra.mxu0 0.0
    %746 = vmatprep.subr.mxu0 0.0
    %747 = vmatpush1.xpose.msra.mxu0 0.0
    %748 = vmatprep.subr.mxu0 0.0
    %749 = vmatpush1.xpose.msra.mxu0 0.0
    %750 = vmatprep.subr.mxu0 0.0
    %v751 = vand.u32 %v45, 4294901760
    %v752 = vsub.f32 %v45, %v751
    %v753 = vand.u32 %v752, 4294901760
    %v754 = vsub.f32 %v752, %v753
    %v755 = vand.u32 %v754, 4294901760
    %756 = vmatpush1.xpose.msra.mxu0 %v755
    %757 = vmatprep.subr.mxu0 0.0
    %758 = vmatpush2.xpose.msra.mxu0 0.0
    %759 = vmatprep.subr.mxu0 0.0
    %760 = vmatpush2.xpose.msra.mxu0 0.0
    %761 = vmatprep.subr.mxu0 0.0
    %762 = vmatpush2.xpose.msra.mxu0 0.0
    %763 = vmatprep.subr.mxu0 0.0
    %764 = vmatpush2.xpose.msra.mxu0 0.0
    %765 = vmatprep.subr.mxu0 0.0
    %766 = vmatpush2.xpose.msra.mxu0 0.0
    %767 = vmatprep.subr.mxu0 0.0
    %768 = vmatpush2.xpose.msra.mxu0 0.0
    %769 = vmatprep.subr.mxu0 0.0
    %770 = vmatpush2.xpose.msra.mxu0 0.0
    %771 = vmatprep.subr.mxu0 0.0
    %772 = vmatpush2.xpose.msra.mxu0 0.0
    %773 = vmatprep.subr.mxu0 0.0
    %774 = vmatpush2.xpose.msra.mxu0 0.0
    %775 = vmatprep.subr.mxu0 0.0
    %776 = vmatpush2.xpose.msra.mxu0 0.0
    %777 = vmatprep.subr.mxu0 0.0
    %778 = vmatpush2.xpose.msra.mxu0 0.0
    %779 = vmatprep.subr.mxu0 0.0
    %780 = vmatpush2.xpose.msra.mxu0 0.0
    %781 = vmatprep.subr.mxu0 0.0
    %782 = vmatpush2.xpose.msra.mxu0 0.0
    %783 = vmatprep.subr.mxu0 0.0
    %784 = vmatpush2.xpose.msra.mxu0 0.0
    %785 = vmatprep.subr.mxu0 0.0
    %786 = vmatpush2.xpose.msra.mxu0 0.0
    %787 = vmatprep.subr.mxu0 0.0
    %788 = vmatpush2.xpose.msra.mxu0 0.0
    %789 = vmatprep.mubr.f32.mxu0 0.0
    %v790 = vand.u32 %v45, 4294901760
    %791 = vmatmul.mubr.f32.gmra.mxu0 %v790
    %v792 = vpop.f32.mrf.mxu0
    %v793 = vadd.f32 %v717, %v792
    %v794 = vpop.f32.mrf.mxu0
    %795 = vdwg.mxu0
    %796 = vmatprep.subr.mxu0 0.0
    %797 = vmatpush1.xpose.msra.mxu0 0.0
    %798 = vmatprep.subr.mxu0 0.0
    %799 = vmatpush1.xpose.msra.mxu0 0.0
    %800 = vmatprep.subr.mxu0 0.0
    %801 = vmatpush1.xpose.msra.mxu0 0.0
    %802 = vmatprep.subr.mxu0 0.0
    %803 = vmatpush1.xpose.msra.mxu0 0.0
    %804 = vmatprep.subr.mxu0 0.0
    %805 = vmatpush1.xpose.msra.mxu0 0.0
    %806 = vmatprep.subr.mxu0 0.0
    %807 = vmatpush1.xpose.msra.mxu0 0.0
    %808 = vmatprep.subr.mxu0 0.0
    %809 = vmatpush1.xpose.msra.mxu0 0.0
    %810 = vmatprep.subr.mxu0 0.0
    %811 = vmatpush1.xpose.msra.mxu0 0.0
    %812 = vmatprep.subr.mxu0 0.0
    %813 = vmatpush1.xpose.msra.mxu0 0.0
    %814 = vmatprep.subr.mxu0 0.0
    %815 = vmatpush1.xpose.msra.mxu0 0.0
    %816 = vmatprep.subr.mxu0 0.0
    %817 = vmatpush1.xpose.msra.mxu0 0.0
    %818 = vmatprep.subr.mxu0 0.0
    %819 = vmatpush1.xpose.msra.mxu0 0.0
    %820 = vmatprep.subr.mxu0 0.0
    %821 = vmatpush1.xpose.msra.mxu0 0.0
    %822 = vmatprep.subr.mxu0 0.0
    %823 = vmatpush1.xpose.msra.mxu0 0.0
    %824 = vmatprep.subr.mxu0 0.0
    %825 = vmatpush1.xpose.msra.mxu0 0.0
    %826 = vmatprep.subr.mxu0 0.0
    %v827 = vand.u32 %v45, 4294901760
    %v828 = vsub.f32 %v45, %v827
    %829 = vmatpush1.xpose.msra.mxu0 %v828
    %830 = vmatprep.subr.mxu0 0.0
    %831 = vmatpush2.xpose.msra.mxu0 0.0
    %832 = vmatprep.subr.mxu0 0.0
    %833 = vmatpush2.xpose.msra.mxu0 0.0
    %834 = vmatprep.subr.mxu0 0.0
    %835 = vmatpush2.xpose.msra.mxu0 0.0
    %836 = vmatprep.subr.mxu0 0.0
    %837 = vmatpush2.xpose.msra.mxu0 0.0
    %838 = vmatprep.subr.mxu0 0.0
    %839 = vmatpush2.xpose.msra.mxu0 0.0
    %840 = vmatprep.subr.mxu0 0.0
    %841 = vmatpush2.xpose.msra.mxu0 0.0
    %842 = vmatprep.subr.mxu0 0.0
    %843 = vmatpush2.xpose.msra.mxu0 0.0
    %844 = vmatprep.subr.mxu0 0.0
    %845 = vmatpush2.xpose.msra.mxu0 0.0
    %846 = vmatprep.subr.mxu0 0.0
    %847 = vmatpush2.xpose.msra.mxu0 0.0
    %848 = vmatprep.subr.mxu0 0.0
    %849 = vmatpush2.xpose.msra.mxu0 0.0
    %850 = vmatprep.subr.mxu0 0.0
    %851 = vmatpush2.xpose.msra.mxu0 0.0
    %852 = vmatprep.subr.mxu0 0.0
    %853 = vmatpush2.xpose.msra.mxu0 0.0
    %854 = vmatprep.subr.mxu0 0.0
    %855 = vmatpush2.xpose.msra.mxu0 0.0
    %856 = vmatprep.subr.mxu0 0.0
    %857 = vmatpush2.xpose.msra.mxu0 0.0
    %858 = vmatprep.subr.mxu0 0.0
    %859 = vmatpush2.xpose.msra.mxu0 0.0
    %860 = vmatprep.subr.mxu0 0.0
    %861 = vmatpush2.xpose.msra.mxu0 0.0
    %862 = vmatprep.mubr.f32.mxu0 0.0
    %v863 = vand.u32 %v45, 4294901760
    %v864 = vsub.f32 %v45, %v863
    %865 = vmatmul.mubr.f32.gmra.mxu0 %v864
    %v866 = vpop.f32.mrf.mxu0
    %v867 = vadd.f32 %v793, %v866
    %v868 = vpop.f32.mrf.mxu0
    %869 = vdwg.mxu0
    %870 = vmatprep.subr.mxu0 0.0
    %871 = vmatpush1.xpose.msra.mxu0 0.0
    %872 = vmatprep.subr.mxu0 0.0
    %873 = vmatpush1.xpose.msra.mxu0 0.0
    %874 = vmatprep.subr.mxu0 0.0
    %875 = vmatpush1.xpose.msra.mxu0 0.0
    %876 = vmatprep.subr.mxu0 0.0
    %877 = vmatpush1.xpose.msra.mxu0 0.0
    %878 = vmatprep.subr.mxu0 0.0
    %879 = vmatpush1.xpose.msra.mxu0 0.0
    %880 = vmatprep.subr.mxu0 0.0
    %881 = vmatpush1.xpose.msra.mxu0 0.0
    %882 = vmatprep.subr.mxu0 0.0
    %883 = vmatpush1.xpose.msra.mxu0 0.0
    %884 = vmatprep.subr.mxu0 0.0
    %885 = vmatpush1.xpose.msra.mxu0 0.0
    %886 = vmatprep.subr.mxu0 0.0
    %887 = vmatpush1.xpose.msra.mxu0 0.0
    %888 = vmatprep.subr.mxu0 0.0
    %889 = vmatpush1.xpose.msra.mxu0 0.0
    %890 = vmatprep.subr.mxu0 0.0
    %891 = vmatpush1.xpose.msra.mxu0 0.0
    %892 = vmatprep.subr.mxu0 0.0
    %893 = vmatpush1.xpose.msra.mxu0 0.0
    %894 = vmatprep.subr.mxu0 0.0
    %895 = vmatpush1.xpose.msra.mxu0 0.0
    %896 = vmatprep.subr.mxu0 0.0
    %897 = vmatpush1.xpose.msra.mxu0 0.0
    %898 = vmatprep.subr.mxu0 0.0
    %899 = vmatpush1.xpose.msra.mxu0 0.0
    %900 = vmatprep.subr.mxu0 0.0
    %v901 = vand.u32 %v45, 4294901760
    %902 = vmatpush1.xpose.msra.mxu0 %v901
    %903 = vmatprep.subr.mxu0 0.0
    %904 = vmatpush2.xpose.msra.mxu0 0.0
    %905 = vmatprep.subr.mxu0 0.0
    %906 = vmatpush2.xpose.msra.mxu0 0.0
    %907 = vmatprep.subr.mxu0 0.0
    %908 = vmatpush2.xpose.msra.mxu0 0.0
    %909 = vmatprep.subr.mxu0 0.0
    %910 = vmatpush2.xpose.msra.mxu0 0.0
    %911 = vmatprep.subr.mxu0 0.0
    %912 = vmatpush2.xpose.msra.mxu0 0.0
    %913 = vmatprep.subr.mxu0 0.0
    %914 = vmatpush2.xpose.msra.mxu0 0.0
    %915 = vmatprep.subr.mxu0 0.0
    %916 = vmatpush2.xpose.msra.mxu0 0.0
    %917 = vmatprep.subr.mxu0 0.0
    %918 = vmatpush2.xpose.msra.mxu0 0.0
    %919 = vmatprep.subr.mxu0 0.0
    %920 = vmatpush2.xpose.msra.mxu0 0.0
    %921 = vmatprep.subr.mxu0 0.0
    %922 = vmatpush2.xpose.msra.mxu0 0.0
    %923 = vmatprep.subr.mxu0 0.0
    %924 = vmatpush2.xpose.msra.mxu0 0.0
    %925 = vmatprep.subr.mxu0 0.0
    %926 = vmatpush2.xpose.msra.mxu0 0.0
    %927 = vmatprep.subr.mxu0 0.0
    %928 = vmatpush2.xpose.msra.mxu0 0.0
    %929 = vmatprep.subr.mxu0 0.0
    %930 = vmatpush2.xpose.msra.mxu0 0.0
    %931 = vmatprep.subr.mxu0 0.0
    %932 = vmatpush2.xpose.msra.mxu0 0.0
    %933 = vmatprep.subr.mxu0 0.0
    %934 = vmatpush2.xpose.msra.mxu0 0.0
    %935 = vmatprep.mubr.f32.mxu0 0.0
    %v936 = vand.u32 %v45, 4294901760
    %v937 = vsub.f32 %v45, %v936
    %v938 = vand.u32 %v937, 4294901760
    %939 = vmatmul.mubr.f32.gmra.mxu0 %v938
    %v940 = vpop.f32.mrf.mxu0
    %v941 = vadd.f32 %v867, %v940
    %v942 = vpop.f32.mrf.mxu0
    %943 = vdwg.mxu0
    %944 = vmatprep.subr.mxu0 0.0
    %945 = vmatpush1.xpose.msra.mxu0 0.0
    %946 = vmatprep.subr.mxu0 0.0
    %947 = vmatpush1.xpose.msra.mxu0 0.0
    %948 = vmatprep.subr.mxu0 0.0
    %949 = vmatpush1.xpose.msra.mxu0 0.0
    %950 = vmatprep.subr.mxu0 0.0
    %951 = vmatpush1.xpose.msra.mxu0 0.0
    %952 = vmatprep.subr.mxu0 0.0
    %953 = vmatpush1.xpose.msra.mxu0 0.0
    %954 = vmatprep.subr.mxu0 0.0
    %955 = vmatpush1.xpose.msra.mxu0 0.0
    %956 = vmatprep.subr.mxu0 0.0
    %957 = vmatpush1.xpose.msra.mxu0 0.0
    %958 = vmatprep.subr.mxu0 0.0
    %959 = vmatpush1.xpose.msra.mxu0 0.0
    %960 = vmatprep.subr.mxu0 0.0
    %961 = vmatpush1.xpose.msra.mxu0 0.0
    %962 = vmatprep.subr.mxu0 0.0
    %963 = vmatpush1.xpose.msra.mxu0 0.0
    %964 = vmatprep.subr.mxu0 0.0
    %965 = vmatpush1.xpose.msra.mxu0 0.0
    %966 = vmatprep.subr.mxu0 0.0
    %967 = vmatpush1.xpose.msra.mxu0 0.0
    %968 = vmatprep.subr.mxu0 0.0
    %969 = vmatpush1.xpose.msra.mxu0 0.0
    %970 = vmatprep.subr.mxu0 0.0
    %971 = vmatpush1.xpose.msra.mxu0 0.0
    %972 = vmatprep.subr.mxu0 0.0
    %973 = vmatpush1.xpose.msra.mxu0 0.0
    %974 = vmatprep.subr.mxu0 0.0
    %v975 = vand.u32 %v45, 4294901760
    %v976 = vsub.f32 %v45, %v975
    %v977 = vand.u32 %v976, 4294901760
    %978 = vmatpush1.xpose.msra.mxu0 %v977
    %979 = vmatprep.subr.mxu0 0.0
    %980 = vmatpush2.xpose.msra.mxu0 0.0
    %981 = vmatprep.subr.mxu0 0.0
    %982 = vmatpush2.xpose.msra.mxu0 0.0
    %983 = vmatprep.subr.mxu0 0.0
    %984 = vmatpush2.xpose.msra.mxu0 0.0
    %985 = vmatprep.subr.mxu0 0.0
    %986 = vmatpush2.xpose.msra.mxu0 0.0
    %987 = vmatprep.subr.mxu0 0.0
    %988 = vmatpush2.xpose.msra.mxu0 0.0
    %989 = vmatprep.subr.mxu0 0.0
    %990 = vmatpush2.xpose.msra.mxu0 0.0
    %991 = vmatprep.subr.mxu0 0.0
    %992 = vmatpush2.xpose.msra.mxu0 0.0
    %993 = vmatprep.subr.mxu0 0.0
    %994 = vmatpush2.xpose.msra.mxu0 0.0
    %995 = vmatprep.subr.mxu0 0.0
    %996 = vmatpush2.xpose.msra.mxu0 0.0
    %997 = vmatprep.subr.mxu0 0.0
    %998 = vmatpush2.xpose.msra.mxu0 0.0
    %999 = vmatprep.subr.mxu0 0.0
    %1000 = vmatpush2.xpose.msra.mxu0 0.0
    %1001 = vmatprep.subr.mxu0 0.0
    %1002 = vmatpush2.xpose.msra.mxu0 0.0
    %1003 = vmatprep.subr.mxu0 0.0
    %1004 = vmatpush2.xpose.msra.mxu0 0.0
    %1005 = vmatprep.subr.mxu0 0.0
    %1006 = vmatpush2.xpose.msra.mxu0 0.0
    %1007 = vmatprep.subr.mxu0 0.0
    %1008 = vmatpush2.xpose.msra.mxu0 0.0
    %1009 = vmatprep.subr.mxu0 0.0
    %1010 = vmatpush2.xpose.msra.mxu0 0.0
    %1011 = vmatprep.mubr.f32.mxu0 0.0
    %v1012 = vand.u32 %v45, 4294901760
    %1013 = vmatmul.mubr.f32.gmra.mxu0 %v1012
    %v1014 = vpop.f32.mrf.mxu0
    %v1015 = vadd.f32 %v941, %v1014
    %v1016 = vpop.f32.mrf.mxu0
    %1017 = vdwg.mxu0
    %1018 = vmatprep.subr.mxu0 0.0
    %1019 = vmatpush1.xpose.msra.mxu0 0.0
    %1020 = vmatprep.subr.mxu0 0.0
    %1021 = vmatpush1.xpose.msra.mxu0 0.0
    %1022 = vmatprep.subr.mxu0 0.0
    %1023 = vmatpush1.xpose.msra.mxu0 0.0
    %1024 = vmatprep.subr.mxu0 0.0
    %1025 = vmatpush1.xpose.msra.mxu0 0.0
    %1026 = vmatprep.subr.mxu0 0.0
    %1027 = vmatpush1.xpose.msra.mxu0 0.0
    %1028 = vmatprep.subr.mxu0 0.0
    %1029 = vmatpush1.xpose.msra.mxu0 0.0
    %1030 = vmatprep.subr.mxu0 0.0
    %1031 = vmatpush1.xpose.msra.mxu0 0.0
    %1032 = vmatprep.subr.mxu0 0.0
    %1033 = vmatpush1.xpose.msra.mxu0 0.0
    %1034 = vmatprep.subr.mxu0 0.0
    %1035 = vmatpush1.xpose.msra.mxu0 0.0
    %1036 = vmatprep.subr.mxu0 0.0
    %1037 = vmatpush1.xpose.msra.mxu0 0.0
    %1038 = vmatprep.subr.mxu0 0.0
    %1039 = vmatpush1.xpose.msra.mxu0 0.0
    %1040 = vmatprep.subr.mxu0 0.0
    %1041 = vmatpush1.xpose.msra.mxu0 0.0
    %1042 = vmatprep.subr.mxu0 0.0
    %1043 = vmatpush1.xpose.msra.mxu0 0.0
    %1044 = vmatprep.subr.mxu0 0.0
    %1045 = vmatpush1.xpose.msra.mxu0 0.0
    %1046 = vmatprep.subr.mxu0 0.0
    %1047 = vmatpush1.xpose.msra.mxu0 0.0
    %1048 = vmatprep.subr.mxu0 0.0
    %v1049 = vand.u32 %v45, 4294901760
    %1050 = vmatpush1.xpose.msra.mxu0 %v1049
    %1051 = vmatprep.subr.mxu0 0.0
    %1052 = vmatpush2.xpose.msra.mxu0 0.0
    %1053 = vmatprep.subr.mxu0 0.0
    %1054 = vmatpush2.xpose.msra.mxu0 0.0
    %1055 = vmatprep.subr.mxu0 0.0
    %1056 = vmatpush2.xpose.msra.mxu0 0.0
    %1057 = vmatprep.subr.mxu0 0.0
    %1058 = vmatpush2.xpose.msra.mxu0 0.0
    %1059 = vmatprep.subr.mxu0 0.0
    %1060 = vmatpush2.xpose.msra.mxu0 0.0
    %1061 = vmatprep.subr.mxu0 0.0
    %1062 = vmatpush2.xpose.msra.mxu0 0.0
    %1063 = vmatprep.subr.mxu0 0.0
    %1064 = vmatpush2.xpose.msra.mxu0 0.0
    %1065 = vmatprep.subr.mxu0 0.0
    %1066 = vmatpush2.xpose.msra.mxu0 0.0
    %1067 = vmatprep.subr.mxu0 0.0
    %1068 = vmatpush2.xpose.msra.mxu0 0.0
    %1069 = vmatprep.subr.mxu0 0.0
    %1070 = vmatpush2.xpose.msra.mxu0 0.0
    %1071 = vmatprep.subr.mxu0 0.0
    %1072 = vmatpush2.xpose.msra.mxu0 0.0
    %1073 = vmatprep.subr.mxu0 0.0
    %1074 = vmatpush2.xpose.msra.mxu0 0.0
    %1075 = vmatprep.subr.mxu0 0.0
    %1076 = vmatpush2.xpose.msra.mxu0 0.0
    %1077 = vmatprep.subr.mxu0 0.0
    %1078 = vmatpush2.xpose.msra.mxu0 0.0
    %1079 = vmatprep.subr.mxu0 0.0
    %1080 = vmatpush2.xpose.msra.mxu0 0.0
    %1081 = vmatprep.subr.mxu0 0.0
    %1082 = vmatpush2.xpose.msra.mxu0 0.0
    %1083 = vmatprep.mubr.f32.mxu0 0.0
    %v1084 = vand.u32 %v45, 4294901760
    %1085 = vmatmul.mubr.f32.gmra.mxu0 %v1084
    %v1086 = vpop.f32.mrf.mxu0
    %v1087 = vadd.f32 %v1015, %v1086
    %v1088 = vpop.f32.mrf.mxu0
    %1089 = vdwg.mxu0
    %vm1090 = vcmask 64512
    %v1091 = vsel %vm1090, %v641, -inf
    %1092 = vmax.xlane.f32.xlu0 %v1091
    %v1093 = vpop.xlane.xlu0 %1092
    %v1094 = vsel %vm1090, %v1087, -inf
    %1095 = vmax.xlane.f32.xlu0 %v1094
    %v1096 = vpop.xlane.xlu0 %1095
    %vm1097 = vcmp.ge.f32.partialorder %v641, %v1093
    %vm1098 = vcmp.ge.f32.partialorder %v1087, %v1096
    %v1099 = vsel %vm1097, 1.0, 0.0
    %v1100 = vsel %vm1098, 1.0, 0.0
    %v1101 = vsel %vm1090, %v1099, 0.0
    %1102 = vadd.xlane.f32.xlu0 %v1101
    %v1103 = vpop.xlane.xlu0 %1102
    %v1104 = vsel %vm1090, %v1100, 0.0
    %1105 = vadd.xlane.f32.xlu0 %v1104
    %v1106 = vpop.xlane.xlu0 %1105
    %v1107 = vadd.f32 %v1103, 0.0
    %v1108 = vadd.f32 %v1106, 0.0
    %vm1109 = vcmp.ge.f32.partialorder %v1107, 4.0
    %vm1110 = vcmp.ge.f32.partialorder %v1108, 4.0
    %v1111 = vsel %vm1097, -inf, %v641
    %v1112 = vsel %vm1098, -inf, %v1087
    %v1113 = vsel %vm1090, %v1111, -inf
    %1114 = vmax.xlane.f32.xlu0 %v1113
    %v1115 = vpop.xlane.xlu0 %1114
    %v1116 = vsel %vm1090, %v1112, -inf
    %1117 = vmax.xlane.f32.xlu0 %v1116
    %v1118 = vpop.xlane.xlu0 %1117
    %vm1119 = vcmp.ge.f32.partialorder %v1111, %v1115
    %vm1120 = vcmp.ge.f32.partialorder %v1112, %v1118
    %v1121 = vsel %vm1119, 1.0, 0.0
    %v1122 = vsel %vm1120, 1.0, 0.0
    %v1123 = vsel %vm1090, %v1121, 0.0
    %1124 = vadd.xlane.f32.xlu0 %v1123
    %v1125 = vpop.xlane.xlu0 %1124
    %v1126 = vsel %vm1090, %v1122, 0.0
    %1127 = vadd.xlane.f32.xlu0 %v1126
    %v1128 = vpop.xlane.xlu0 %1127
    %v1129 = vadd.f32 %v1107, %v1125
    %v1130 = vadd.f32 %v1108, %v1128
    %v1131 = vsel %vm1109, %v1093, %v1115
    %v1132 = vsel %vm1110, %v1096, %v1118
    %vm1133 = vcmp.ge.f32.partialorder %v1129, 4.0
    %vm1134 = vcmp.ge.f32.partialorder %v1130, 4.0
    %vm1135 = vmor %vm1109, %vm1133
    %vm1136 = vmor %vm1110, %vm1134
    %v1137 = vsel %vm1119, -inf, %v1111
    %v1138 = vsel %vm1120, -inf, %v1112
    %v1139 = vsel %vm1090, %v1137, -inf
    %1140 = vmax.xlane.f32.xlu0 %v1139
    %v1141 = vpop.xlane.xlu0 %1140
    %v1142 = vsel %vm1090, %v1138, -inf
    %1143 = vmax.xlane.f32.xlu0 %v1142
    %v1144 = vpop.xlane.xlu0 %1143
    %vm1145 = vcmp.ge.f32.partialorder %v1137, %v1141
    %vm1146 = vcmp.ge.f32.partialorder %v1138, %v1144
    %v1147 = vsel %vm1145, 1.0, 0.0
    %v1148 = vsel %vm1146, 1.0, 0.0
    %v1149 = vsel %vm1090, %v1147, 0.0
    %1150 = vadd.xlane.f32.xlu0 %v1149
    %v1151 = vpop.xlane.xlu0 %1150
    %v1152 = vsel %vm1090, %v1148, 0.0
    %1153 = vadd.xlane.f32.xlu0 %v1152
    %v1154 = vpop.xlane.xlu0 %1153
    %v1155 = vadd.f32 %v1129, %v1151
    %v1156 = vadd.f32 %v1130, %v1154
    %v1157 = vsel %vm1135, %v1131, %v1141
    %v1158 = vsel %vm1136, %v1132, %v1144
    %vm1159 = vcmp.ge.f32.partialorder %v1155, 4.0
    %vm1160 = vcmp.ge.f32.partialorder %v1156, 4.0
    %vm1161 = vmor %vm1135, %vm1159
    %vm1162 = vmor %vm1136, %vm1160
    %v1163 = vsel %vm1145, -inf, %v1137
    %v1164 = vsel %vm1146, -inf, %v1138
    %v1165 = vsel %vm1090, %v1163, -inf
    %1166 = vmax.xlane.f32.xlu0 %v1165
    %v1167 = vpop.xlane.xlu0 %1166
    %v1168 = vsel %vm1090, %v1164, -inf
    %1169 = vmax.xlane.f32.xlu0 %v1168
    %v1170 = vpop.xlane.xlu0 %1169
    %v1171 = vsel %vm1161, %v1157, %v1167
    %v1172 = vsel %vm1162, %v1158, %v1170
    %vm1173 = vcmp.ge.f32.partialorder %v641, %v1171
    %vm1174 = vcmp.ge.f32.partialorder %v1087, %v1172
    %v1175 = vsel %vm1173, 1.0, 0.0
    %v1176 = vsel %vm1174, 1.0, 0.0
    %v1177 = vsel %vm1090, %v1175, 0.0
    %1178 = vadd.xlane.f32.xlu0 %v1177
    %v1179 = vpop.xlane.xlu0 %1178
    %v1180 = vsel %vm1090, %v1176, 0.0
    %1181 = vadd.xlane.f32.xlu0 %v1180
    %v1182 = vpop.xlane.xlu0 %1181
    %v1183 = vrsqrt.pop %v1179
    %v1184 = vrsqrt.pop %v1182
    %v1185 = vmul.f32 %v192, %v1183
    %v1186 = vmul.f32 %v196, %v1184
    %1188 = vset.pattern.permute.xlu0 0
    %1189 = vperm.xlu0 %1188, %v1175
    %v1190 = vpop.permute.xlu0 %1189
    %1193 = vset.pattern.permute.xlu0 0
    %1194 = vperm.xlu0 %1193, %v1176
    %v1195 = vpop.permute.xlu0 %1194
    %v1197 = vlaneseq
    %v1198 = vshrl.u32 %v1197, 7
    %v1199 = vsub.s32 0, %v1198
    %v1200 = vrot.slane %v1185, %v1199
    %v1201 = vlaneseq
    %v1202 = vshrl.u32 %v1201, 7
    %v1203 = vsub.s32 0, %v1202
    %v1204 = vrot.slane %v1186, %v1203
    %v1205 = vmul.f32 %v1190, %v1200
    %v1206 = vmul.f32 %v1195, %v1204
    %v1207 = vadd.f32 %v1205, 0.0
    %v1208 = vadd.f32 %v1206, 0.0
    %1209 = vset.pattern.permute.xlu0 1
    %1210 = vperm.xlu0 %1209, %v1175
    %v1211 = vpop.permute.xlu0 %1210
    %1213 = vset.pattern.permute.xlu0 1
    %1214 = vperm.xlu0 %1213, %v1176
    %v1215 = vpop.permute.xlu0 %1214
    %v1217 = vlaneseq
    %v1218 = vshrl.u32 %v1217, 7
    %v1219 = vsub.s32 1, %v1218
    %v1220 = vrot.slane %v1185, %v1219
    %v1221 = vlaneseq
    %v1222 = vshrl.u32 %v1221, 7
    %v1223 = vsub.s32 1, %v1222
    %v1224 = vrot.slane %v1186, %v1223
    %v1225 = vmul.f32 %v1211, %v1220
    %v1226 = vmul.f32 %v1215, %v1224
    %v1227 = vadd.f32 %v1207, %v1225
    %v1228 = vadd.f32 %v1208, %v1226
    %1229 = vset.pattern.permute.xlu0 2
    %1230 = vperm.xlu0 %1229, %v1175
    %v1231 = vpop.permute.xlu0 %1230
    %1233 = vset.pattern.permute.xlu0 2
    %1234 = vperm.xlu0 %1233, %v1176
    %v1235 = vpop.permute.xlu0 %1234
    %v1237 = vlaneseq
    %v1238 = vshrl.u32 %v1237, 7
    %v1239 = vsub.s32 2, %v1238
    %v1240 = vrot.slane %v1185, %v1239
    %v1241 = vlaneseq
    %v1242 = vshrl.u32 %v1241, 7
    %v1243 = vsub.s32 2, %v1242
    %v1244 = vrot.slane %v1186, %v1243
    %v1245 = vmul.f32 %v1231, %v1240
    %v1246 = vmul.f32 %v1235, %v1244
    %v1247 = vadd.f32 %v1227, %v1245
    %v1248 = vadd.f32 %v1228, %v1246
    %1249 = vset.pattern.permute.xlu0 3
    %1250 = vperm.xlu0 %1249, %v1175
    %v1251 = vpop.permute.xlu0 %1250
    %1253 = vset.pattern.permute.xlu0 3
    %1254 = vperm.xlu0 %1253, %v1176
    %v1255 = vpop.permute.xlu0 %1254
    %v1257 = vlaneseq
    %v1258 = vshrl.u32 %v1257, 7
    %v1259 = vsub.s32 3, %v1258
    %v1260 = vrot.slane %v1185, %v1259
    %v1261 = vlaneseq
    %v1262 = vshrl.u32 %v1261, 7
    %v1263 = vsub.s32 3, %v1262
    %v1264 = vrot.slane %v1186, %v1263
    %v1265 = vmul.f32 %v1251, %v1260
    %v1266 = vmul.f32 %v1255, %v1264
    %v1267 = vadd.f32 %v1247, %v1265
    %v1268 = vadd.f32 %v1248, %v1266
    %1269 = vset.pattern.permute.xlu0 4
    %1270 = vperm.xlu0 %1269, %v1175
    %v1271 = vpop.permute.xlu0 %1270
    %1273 = vset.pattern.permute.xlu0 4
    %1274 = vperm.xlu0 %1273, %v1176
    %v1275 = vpop.permute.xlu0 %1274
    %v1277 = vlaneseq
    %v1278 = vshrl.u32 %v1277, 7
    %v1279 = vsub.s32 4, %v1278
    %v1280 = vrot.slane %v1185, %v1279
    %v1281 = vlaneseq
    %v1282 = vshrl.u32 %v1281, 7
    %v1283 = vsub.s32 4, %v1282
    %v1284 = vrot.slane %v1186, %v1283
    %v1285 = vmul.f32 %v1271, %v1280
    %v1286 = vmul.f32 %v1275, %v1284
    %v1287 = vadd.f32 %v1267, %v1285
    %v1288 = vadd.f32 %v1268, %v1286
    %1289 = vset.pattern.permute.xlu0 5
    %1290 = vperm.xlu0 %1289, %v1175
    %v1291 = vpop.permute.xlu0 %1290
    %1293 = vset.pattern.permute.xlu0 5
    %1294 = vperm.xlu0 %1293, %v1176
    %v1295 = vpop.permute.xlu0 %1294
    %v1297 = vlaneseq
    %v1298 = vshrl.u32 %v1297, 7
    %v1299 = vsub.s32 5, %v1298
    %v1300 = vrot.slane %v1185, %v1299
    %v1301 = vlaneseq
    %v1302 = vshrl.u32 %v1301, 7
    %v1303 = vsub.s32 5, %v1302
    %v1304 = vrot.slane %v1186, %v1303
    %v1305 = vmul.f32 %v1291, %v1300
    %v1306 = vmul.f32 %v1295, %v1304
    %v1307 = vadd.f32 %v1287, %v1305
    %v1308 = vadd.f32 %v1288, %v1306
    %1309 = vset.pattern.permute.xlu0 6
    %1310 = vperm.xlu0 %1309, %v1175
    %v1311 = vpop.permute.xlu0 %1310
    %1313 = vset.pattern.permute.xlu0 6
    %1314 = vperm.xlu0 %1313, %v1176
    %v1315 = vpop.permute.xlu0 %1314
    %v1317 = vlaneseq
    %v1318 = vshrl.u32 %v1317, 7
    %v1319 = vsub.s32 6, %v1318
    %v1320 = vrot.slane %v1185, %v1319
    %v1321 = vlaneseq
    %v1322 = vshrl.u32 %v1321, 7
    %v1323 = vsub.s32 6, %v1322
    %v1324 = vrot.slane %v1186, %v1323
    %v1325 = vmul.f32 %v1311, %v1320
    %v1326 = vmul.f32 %v1315, %v1324
    %v1327 = vadd.f32 %v1307, %v1325
    %v1328 = vadd.f32 %v1308, %v1326
    %1329 = vset.pattern.permute.xlu0 7
    %1330 = vperm.xlu0 %1329, %v1175
    %v1331 = vpop.permute.xlu0 %1330
    %1333 = vset.pattern.permute.xlu0 7
    %1334 = vperm.xlu0 %1333, %v1176
    %v1335 = vpop.permute.xlu0 %1334
    %v1337 = vlaneseq
    %v1338 = vshrl.u32 %v1337, 7
    %v1339 = vsub.s32 7, %v1338
    %v1340 = vrot.slane %v1185, %v1339
    %v1341 = vlaneseq
    %v1342 = vshrl.u32 %v1341, 7
    %v1343 = vsub.s32 7, %v1342
    %v1344 = vrot.slane %v1186, %v1343
    %v1345 = vmul.f32 %v1331, %v1340
    %v1346 = vmul.f32 %v1335, %v1344
    %v1347 = vadd.f32 %v1327, %v1345
    %v1348 = vadd.f32 %v1328, %v1346
    %v1349 = vmul.f32 %v1347, %v1183
    %v1350 = vmul.f32 %v1348, %v1184
    %v1351 = vadd.f32 %v1349, %v190
    %v1352 = vadd.f32 %v1350, %v194
    %1353 = vadd.xlane.f32.xlu0 %v1351
    %v1354 = vpop.xlane.xlu0 %1353
    %1355 = vadd.xlane.f32.xlu0 %v1352
    %v1356 = vpop.xlane.xlu0 %1355
    %v1357 = vrcp.pop 128.0
    %v1358 = vmul.f32 %v1354, %v1357
    %v1359 = vmul.f32 %v1356, %v1357
    %v1360 = vadd.f32 %v1358, %v1359
    %v1361 = vrcp.pop 2.0
    %v1362 = vmul.f32 %v1360, %v1361
    %v1363 = vsub.f32 %v1351, %v1362
    %v1364 = vsub.f32 %v1352, %v1362
    %v1365 = vmul.f32 %v1363, %v1363
    %v1366 = vmul.f32 %v1364, %v1364
    %1367 = vadd.xlane.f32.xlu0 %v1365
    %v1368 = vpop.xlane.xlu0 %1367
    %1369 = vadd.xlane.f32.xlu0 %v1366
    %v1370 = vpop.xlane.xlu0 %1369
    %v1371 = vmul.f32 %v1368, %v1357
    %v1372 = vmul.f32 %v1370, %v1357
    %v1373 = vadd.f32 %v1371, %v1372
    %v1374 = vmul.f32 %v1373, %v1361
    %v1375 = vadd.f32 %v1374, 1e-05
    %v1376 = vrsqrt.pop %v1375
    %v1377 = vmul.f32 %v1363, %v1376
    %v1378 = vmul.f32 %v1364, %v1376
    %v1379 = vadd.f32 %v44, %v1377
    %v1380 = vadd.f32 %v45, %v1378
    %v1381 = vmax.f32 %v1379, 0.0
    %v1382 = vmax.f32 %v1380, 0.0
    %1383 = vst [vmem:[#allocation7] sm:$0xff] %v1381
    %1384 = vst [vmem:[#allocation7 + $0x8] sm:$0xff] %v1382
    // Predicated region
    $region22: #{tpu_custom_call.1} parent=1 // pred_check
      _
    $region23: #{tpu_custom_call.1} parent=1 // pred_check_branch
      %1386 = sbr.rel (0) target = $region25
    $region24: #{tpu_custom_call.1} parent=1 // pred_region
      %s1388 = ssub.s32 256, 256
      %1389 = vsyncadd [#allocation4], %s1388
      %s1390 = sshll.u32 [#allocation7], 4
      %s1391 = int_to_ptr.vmem [resolvable:$true] %s1390
      %1396 = dma.vmem_to_hbm [thread:$0]  %s1391, 256, %s3, [#allocation4], 128, 128, 8
    $region25: #{tpu_custom_call.1} parent=1 // pred_fallthru
      _
    // Predicated region
    $region26: #{tpu_custom_call.1} parent=1 // pred_check
      _
    $region27: #{tpu_custom_call.1} parent=1 // pred_check_branch
      %1398 = sbr.rel (0) target = $region29
    $region28: #{tpu_custom_call.1} parent=1 // pred_region
      %1399 = dma.done [#allocation4], 256
    $region29: #{tpu_custom_call.1} parent=1 // pred_fallthru
      _
    %1400 = vsyncpa [#allocation3], 1
    %1401 = vsyncpa [#allocation6], 1
    %1402 = vsyncpa [#allocation4], 1

</llo_original>
